<compile_context>
chip_gen: v6e
topology: v6e:2x2x1
jax: 0.10.0
libtpu: 0.0.40
codegen_flags: <defaults>
</compile_context>

<pallas_src>
import functools

import jax
import jax.numpy as jnp
from jax.experimental import pallas as pl
from jax.experimental.pallas import tpu as pltpu


# ----------------------------------------------------------------------------
# Pallas kernel: fused transposed GEMM + bias + activation
#   o[N, M] = act(w[N, K] @ x[K, M] + b[N, 1])
# ----------------------------------------------------------------------------
def _gemm_bias_act_kernel(w_ref, x_ref, b_ref, o_ref, *, activation):
    acc = jnp.dot(w_ref[...], x_ref[...], preferred_element_type=jnp.float32)
    acc = acc + b_ref[...]                       # [N,1] broadcast over lanes
    if activation == "relu":
        acc = jnp.maximum(acc, 0.0)
    elif activation == "sigmoid":
        # exp runs on the EUP; approx reciprocal keeps the divide off the VALU.
        acc = pl.reciprocal(1.0 + jnp.exp(-acc), approx=True)
        acc = jnp.clip(acc, 0.0, 1.0)            # guard approx-recip overshoot
    o_ref[...] = acc.astype(o_ref.dtype)


def _choose_m_tile(m):
    """Fattest lane-aligned tile that still yields >=2 grid steps (v7x megacore);
    otherwise a single full-extent block (no padding round trips)."""
    for tm in (512, 256, 128):
        if m % tm == 0 and m // tm >= 2:
            return tm
    return m


def gemm_bias_act(w_t, x_t, b_col, activation):
    """w_t: [N, K] bf16, x_t: [K, M] bf16, b_col: [N, 1] f32 -> [N, M] f32."""
    n, k = w_t.shape
    k2, m = x_t.shape
    assert k == k2
    tm = _choose_m_tile(m)
    return pl.pallas_call(
        functools.partial(_gemm_bias_act_kernel, activation=activation),
        out_shape=jax.ShapeDtypeStruct((n, m), jnp.float32),
        grid_spec=pltpu.PrefetchScalarGridSpec(
            num_scalar_prefetch=0,
            grid=(m // tm,),
            in_specs=[
                pl.BlockSpec((n, k), lambda i: (0, 0)),    # weight: resident
                pl.BlockSpec((k, tm), lambda i: (0, i)),   # activation tile
                pl.BlockSpec((n, 1), lambda i: (0, 0)),    # bias: resident
            ],
            out_specs=pl.BlockSpec((n, tm), lambda i: (0, i)),
        ),
        compiler_params=pltpu.CompilerParams(
            dimension_semantics=("parallel",),
        ),
    )(w_t, x_t, b_col)


# ----------------------------------------------------------------------------
# Conv layers lowered to transposed GEMMs (activations kept in C,B,H,W layout)
# ----------------------------------------------------------------------------
def conv2d_s2p1k3(a_cbhw, w_oihw, b, activation):
    """Conv2d(k=3, s=2, p=1) on a [C,B,H,W] activation -> [Cout,B,H/2,W/2]."""
    c, bsz, h, w = a_cbhw.shape
    cout = w_oihw.shape[0]
    ho, wo = h // 2, w // 2
    m = bsz * ho * wo
    ap = jnp.pad(a_cbhw, ((0, 0), (0, 0), (1, 1), (1, 1)))
    taps = []
    for dh in range(3):
        for dw in range(3):
            v = ap[:, :, dh::2, dw::2][:, :, :ho, :wo]    # [C,B,Ho,Wo]
            taps.append(v.reshape(c, m))
    x_t = jnp.concatenate(taps, axis=0).astype(jnp.bfloat16)            # [9C, M]
    w_t = jnp.transpose(w_oihw, (0, 2, 3, 1)).reshape(cout, 9 * c)
    w_t = w_t.astype(jnp.bfloat16)                                      # [Cout, 9C]
    b_col = b.reshape(cout, 1).astype(jnp.float32)
    o_t = gemm_bias_act(w_t, x_t, b_col, activation)                    # [Cout, M]
    return o_t.reshape(cout, bsz, ho, wo)


def conv_transpose2d_s2p1op1k3(a_cbhw, w_iohw, b, activation):
    """ConvTranspose2d(k=3, s=2, p=1, output_padding=1) on [C,B,H,W] -> [Cout,B,2H,2W].

    Sub-pixel decomposition: the 4 output parities (ph, pw) depend only on input
    taps at offsets (di, dj) in {0,1}^2:
      out[2i,   2j  ] = x[i,j]   . w[1,1]
      out[2i,   2j+1] = x[i,j]   . w[1,2] + x[i,j+1]  . w[1,0]
      out[2i+1, 2j  ] = x[i,j]   . w[2,1] + x[i+1,j]  . w[0,1]
      out[2i+1, 2j+1] = x[i,j]   . w[2,2] + x[i,j+1]  . w[2,0]
                      + x[i+1,j] . w[0,2] + x[i+1,j+1]. w[0,0]
    so the whole layer is one GEMM with K = 4*Cin, N = 4*Cout.
    """
    c, bsz, h, w = a_cbhw.shape
    cout = w_iohw.shape[1]
    m = bsz * h * w
    ap = jnp.pad(a_cbhw, ((0, 0), (0, 0), (0, 1), (0, 1)))
    taps = []
    for di in range(2):
        for dj in range(2):
            taps.append(ap[:, :, di:di + h, dj:dj + w].reshape(c, m))
    x_t = jnp.concatenate(taps, axis=0).astype(jnp.bfloat16)            # [4C, M]

    wt = jnp.transpose(w_iohw, (1, 0, 2, 3))                            # [Cout,Cin,kh,kw]
    z = jnp.zeros((cout, c), wt.dtype)
    blk = lambda kh, kw: wt[:, :, kh, kw]
    # rows: output phases (ee, eo, oe, oo); cols: taps (0,0),(0,1),(1,0),(1,1)
    w_t = jnp.concatenate([
        jnp.concatenate([blk(1, 1), z,         z,         z],          axis=1),
        jnp.concatenate([blk(1, 2), blk(1, 0), z,         z],          axis=1),
        jnp.concatenate([blk(2, 1), z,         blk(0, 1), z],          axis=1),
        jnp.concatenate([blk(2, 2), blk(2, 0), blk(0, 2), blk(0, 0)],  axis=1),
    ], axis=0).astype(jnp.bfloat16)                                     # [4Cout, 4C]
    b_col = jnp.tile(b.reshape(1, cout), (4, 1)).reshape(4 * cout, 1)
    b_col = b_col.astype(jnp.float32)

    o_t = gemm_bias_act(w_t, x_t, b_col, activation)                    # [4Cout, M]
    o = o_t.reshape(2, 2, cout, bsz, h, w)                              # (ph,pw,c,b,i,j)
    o = jnp.transpose(o, (2, 3, 4, 0, 5, 1)).reshape(cout, bsz, 2 * h, 2 * w)
    return o


# ----------------------------------------------------------------------------
# Parameter init (deterministic, PyTorch-default-style uniform bounds)
# ----------------------------------------------------------------------------
def _init_conv(key, cout, cin, k):
    bound = 1.0 / jnp.sqrt(cin * k * k)
    kw_, kb_ = jax.random.split(key)
    w = jax.random.uniform(kw_, (cout, cin, k, k), jnp.float32, -bound, bound)
    b = jax.random.uniform(kb_, (cout,), jnp.float32, -bound, bound)
    return w, b


def _init_convT(key, cin, cout, k):
    bound = 1.0 / jnp.sqrt(cin * k * k)  # PyTorch uses in_channels * k * k
    kw_, kb_ = jax.random.split(key)
    w = jax.random.uniform(kw_, (cin, cout, k, k), jnp.float32, -bound, bound)
    b = jax.random.uniform(kb_, (cout,), jnp.float32, -bound, bound)
    return w, b


def init_autoencoder_params(key):
    keys = jax.random.split(key, 6)
    return {
        "enc1": _init_conv(keys[0], 16, 3, 3),
        "enc2": _init_conv(keys[1], 32, 16, 3),
        "enc3": _init_conv(keys[2], 64, 32, 3),
        "dec1": _init_convT(keys[3], 64, 32, 3),
        "dec2": _init_convT(keys[4], 32, 16, 3),
        "dec3": _init_convT(keys[5], 16, 3, 3),
    }


# ----------------------------------------------------------------------------
# Forward pass (matches Autoencoder.forward; input/output NCHW like PyTorch)
# ----------------------------------------------------------------------------
def autoencoder_forward(params, x_nchw):
    a = jnp.transpose(x_nchw, (1, 0, 2, 3))          # NCHW -> C,B,H,W
    # encoder
    a = conv2d_s2p1k3(a, *params["enc1"], activation="relu")
    a = conv2d_s2p1k3(a, *params["enc2"], activation="relu")
    a = conv2d_s2p1k3(a, *params["enc3"], activation="relu")
    # decoder
    a = conv_transpose2d_s2p1op1k3(a, *params["dec1"], activation="relu")
    a = conv_transpose2d_s2p1op1k3(a, *params["dec2"], activation="relu")
    a = conv_transpose2d_s2p1op1k3(a, *params["dec3"], activation="sigmoid")
    return jnp.transpose(a, (1, 0, 2, 3))            # C,B,H,W -> NCHW


# ----------------------------------------------------------------------------
# Plain-XLA f32 reference (for a loose numerical cross-check only)
# ----------------------------------------------------------------------------
def _ref_conv(x, w, b):
    y = jax.lax.conv_general_dilated(
        x, w, window_strides=(2, 2), padding=((1, 1), (1, 1)),
        dimension_numbers=("NCHW", "OIHW", "NCHW"))
    return y + b[None, :, None, None]


def _ref_convT(x, w_iohw, b):
    w_oihw = jnp.transpose(w_iohw[:, :, ::-1, ::-1], (1, 0, 2, 3))
    y = jax.lax.conv_general_dilated(
        x, w_oihw, window_strides=(1, 1), padding=((1, 2), (1, 2)),
        lhs_dilation=(2, 2), dimension_numbers=("NCHW", "OIHW", "NCHW"))
    return y + b[None, :, None, None]


def reference_forward(params, x):
    a = jax.nn.relu(_ref_conv(x, *params["enc1"]))
    a = jax.nn.relu(_ref_conv(a, *params["enc2"]))
    a = jax.nn.relu(_ref_conv(a, *params["enc3"]))
    a = jax.nn.relu(_ref_convT(a, *params["dec1"]))
    a = jax.nn.relu(_ref_convT(a, *params["dec2"]))
    a = jax.nn.sigmoid(_ref_convT(a, *params["dec3"]))
    return a


if __name__ == "__main__":
    key = jax.random.PRNGKey(0)
    k_params, k_input = jax.random.split(key)
    params = init_autoencoder_params(k_params)

    # Small deterministic input: batch=2, channels=3 (module requires 3), 16x16 spatial.
    x = jax.random.uniform(k_input, (2, 3, 16, 16), jnp.float32)

    fwd = jax.jit(autoencoder_forward)
    y = fwd(params, x)
    jax.block_until_ready(y)

    assert y.shape == (2, 3, 16, 16), y.shape
    assert bool(jnp.all(jnp.isfinite(y)))
    assert bool(jnp.all((y >= 0.0) & (y <= 1.0)))      # sigmoid output range

    # Loose cross-check vs f32 XLA reference (kernel uses bf16 MXU operands).
    y_ref = reference_forward(params, x)
    max_err = float(jnp.max(jnp.abs(y - y_ref)))
    assert max_err < 0.1, max_err

    print("KERNEL_OK")
</pallas_src>

<mosaic_0001>
module attributes {stable_mosaic.version = 11 : i64} {
  func.func @_gemm_bias_act_kernel(%arg0: i32, %arg1: memref<16x27xbf16, #tpu.memory_space<vmem>>, %arg2: memref<27x128xbf16, #tpu.memory_space<vmem>>, %arg3: memref<16x1xf32, #tpu.memory_space<vmem>>, %arg4: memref<16x128xf32, #tpu.memory_space<vmem>>) attributes {dimension_semantics = [#tpu.dimension_semantics<parallel>], iteration_bounds = array<i64: 1>, scalar_prefetch = 0 : i64, scratch_operands = 0 : i64, tpu.core_type = #tpu.core_type<tc>, window_params = [{pipeline_mode = #tpu.pipeline_mode<synchronous>, transform_indices = @transform_0, window_bounds = array<i64: 16, 27>}, {transform_indices = @transform_1, window_bounds = array<i64: 27, 128>}, {pipeline_mode = #tpu.pipeline_mode<synchronous>, transform_indices = @transform_2, window_bounds = array<i64: 16, 1>}, {transform_indices = @transform_3, window_bounds = array<i64: 16, 128>}]} {
    %c0 = arith.constant 0 : index
    %c0_0 = arith.constant 0 : index
    %0 = vector.load %arg1[%c0, %c0_0] : memref<16x27xbf16, #tpu.memory_space<vmem>>, vector<16x27xbf16>
    %c0_1 = arith.constant 0 : index
    %c0_2 = arith.constant 0 : index
    %1 = vector.load %arg2[%c0_1, %c0_2] : memref<27x128xbf16, #tpu.memory_space<vmem>>, vector<27x128xbf16>
    %cst = arith.constant dense<0.000000e+00> : vector<16x128xf32>
    %2 = tpu.matmul %0, %1, %cst {dimension_numbers = #tpu.dot_dimension_numbers<[1], [0], [0], [1], [0, 0, 1, 1], [], []>} : vector<16x27xbf16>, vector<27x128xbf16>, vector<16x128xf32> -> vector<16x128xf32>
    %c0_3 = arith.constant 0 : index
    %c0_4 = arith.constant 0 : index
    %3 = vector.load %arg3[%c0_3, %c0_4] : memref<16x1xf32, #tpu.memory_space<vmem>>, vector<16x1xf32>
    %4 = vector.broadcast %3 : vector<16x1xf32> to vector<16x128xf32>
    %5 = arith.addf %2, %4 : vector<16x128xf32>
    %cst_5 = arith.constant 0.000000e+00 : f32
    %6 = vector.broadcast %cst_5 : f32 to vector<16x128xf32>
    %7 = arith.maximumf %5, %6 : vector<16x128xf32>
    %c0_6 = arith.constant 0 : index
    %c0_7 = arith.constant 0 : index
    %8 = vector.load %arg4[%c0_6, %c0_7] : memref<16x128xf32, #tpu.memory_space<vmem>>, vector<16x128xf32>
    tpu.vector_store %arg4[%c0_6, %c0_7], %7 {strides = array<i32>} : memref<16x128xf32, #tpu.memory_space<vmem>>, vector<16x128xf32>,
    return
  }
  func.func @transform_0(%arg0: i32) -> (i32, i32) {
    %c0_i32 = arith.constant 0 : i32
    %c0_i32_0 = arith.constant 0 : i32
    %c0_i32_1 = arith.constant 0 : i32
    return %c0_i32, %c0_i32_0 : i32, i32
  }
  func.func @transform_1(%arg0: i32) -> (i32, i32) {
    %c0_i32 = arith.constant 0 : i32
    %c0_i32_0 = arith.constant 0 : i32
    return %c0_i32, %arg0 : i32, i32
  }
  func.func @transform_2(%arg0: i32) -> (i32, i32) {
    %c0_i32 = arith.constant 0 : i32
    %c0_i32_0 = arith.constant 0 : i32
    %c0_i32_1 = arith.constant 0 : i32
    return %c0_i32, %c0_i32_0 : i32, i32
  }
  func.func @transform_3(%arg0: i32) -> (i32, i32) {
    %c0_i32 = arith.constant 0 : i32
    %c0_i32_0 = arith.constant 0 : i32
    return %c0_i32, %arg0 : i32, i32
  }
}

module attributes {stable_mosaic.version = 11 : i64} {
  func.func @_gemm_bias_act_kernel(%arg0: i32, %arg1: memref<32x144xbf16, #tpu.memory_space<vmem>>, %arg2: memref<144x32xbf16, #tpu.memory_space<vmem>>, %arg3: memref<32x1xf32, #tpu.memory_space<vmem>>, %arg4: memref<32x32xf32, #tpu.memory_space<vmem>>) attributes {dimension_semantics = [#tpu.dimension_semantics<parallel>], iteration_bounds = array<i64: 1>, scalar_prefetch = 0 : i64, scratch_operands = 0 : i64, tpu.core_type = #tpu.core_type<tc>, window_params = [{pipeline_mode = #tpu.pipeline_mode<synchronous>, transform_indices = @transform_0, window_bounds = array<i64: 32, 144>}, {transform_indices = @transform_1, window_bounds = array<i64: 144, 32>}, {pipeline_mode = #tpu.pipeline_mode<synchronous>, transform_indices = @transform_2, window_bounds = array<i64: 32, 1>}, {transform_indices = @transform_3, window_bounds = array<i64: 32, 32>}]} {
    %c0 = arith.constant 0 : index
    %c0_0 = arith.constant 0 : index
    %0 = vector.load %arg1[%c0, %c0_0] : memref<32x144xbf16, #tpu.memory_space<vmem>>, vector<32x144xbf16>
    %c0_1 = arith.constant 0 : index
    %c0_2 = arith.constant 0 : index
    %1 = vector.load %arg2[%c0_1, %c0_2] : memref<144x32xbf16, #tpu.memory_space<vmem>>, vector<144x32xbf16>
    %cst = arith.constant dense<0.000000e+00> : vector<32x32xf32>
    %2 = tpu.matmul %0, %1, %cst {dimension_numbers = #tpu.dot_dimension_numbers<[1], [0], [0], [1], [0, 0, 1, 1], [], []>} : vector<32x144xbf16>, vector<144x32xbf16>, vector<32x32xf32> -> vector<32x32xf32>
    %c0_3 = arith.constant 0 : index
    %c0_4 = arith.constant 0 : index
    %3 = vector.load %arg3[%c0_3, %c0_4] : memref<32x1xf32, #tpu.memory_space<vmem>>, vector<32x1xf32>
    %4 = vector.broadcast %3 : vector<32x1xf32> to vector<32x32xf32>
    %5 = arith.addf %2, %4 : vector<32x32xf32>
    %cst_5 = arith.constant 0.000000e+00 : f32
    %6 = vector.broadcast %cst_5 : f32 to vector<32x32xf32>
    %7 = arith.maximumf %5, %6 : vector<32x32xf32>
    %c0_6 = arith.constant 0 : index
    %c0_7 = arith.constant 0 : index
    %8 = vector.load %arg4[%c0_6, %c0_7] : memref<32x32xf32, #tpu.memory_space<vmem>>, vector<32x32xf32>
    tpu.vector_store %arg4[%c0_6, %c0_7], %7 {strides = array<i32>} : memref<32x32xf32, #tpu.memory_space<vmem>>, vector<32x32xf32>,
    return
  }
  func.func @transform_0(%arg0: i32) -> (i32, i32) {
    %c0_i32 = arith.constant 0 : i32
    %c0_i32_0 = arith.constant 0 : i32
    %c0_i32_1 = arith.constant 0 : i32
    return %c0_i32, %c0_i32_0 : i32, i32
  }
  func.func @transform_1(%arg0: i32) -> (i32, i32) {
    %c0_i32 = arith.constant 0 : i32
    %c0_i32_0 = arith.constant 0 : i32
    return %c0_i32, %arg0 : i32, i32
  }
  func.func @transform_2(%arg0: i32) -> (i32, i32) {
    %c0_i32 = arith.constant 0 : i32
    %c0_i32_0 = arith.constant 0 : i32
    %c0_i32_1 = arith.constant 0 : i32
    return %c0_i32, %c0_i32_0 : i32, i32
  }
  func.func @transform_3(%arg0: i32) -> (i32, i32) {
    %c0_i32 = arith.constant 0 : i32
    %c0_i32_0 = arith.constant 0 : i32
    return %c0_i32, %arg0 : i32, i32
  }
}

module attributes {stable_mosaic.version = 11 : i64} {
  func.func @_gemm_bias_act_kernel(%arg0: i32, %arg1: memref<64x288xbf16, #tpu.memory_space<vmem>>, %arg2: memref<288x8xbf16, #tpu.memory_space<vmem>>, %arg3: memref<64x1xf32, #tpu.memory_space<vmem>>, %arg4: memref<64x8xf32, #tpu.memory_space<vmem>>) attributes {dimension_semantics = [#tpu.dimension_semantics<parallel>], iteration_bounds = array<i64: 1>, scalar_prefetch = 0 : i64, scratch_operands = 0 : i64, tpu.core_type = #tpu.core_type<tc>, window_params = [{pipeline_mode = #tpu.pipeline_mode<synchronous>, transform_indices = @transform_0, window_bounds = array<i64: 64, 288>}, {transform_indices = @transform_1, window_bounds = array<i64: 288, 8>}, {pipeline_mode = #tpu.pipeline_mode<synchronous>, transform_indices = @transform_2, window_bounds = array<i64: 64, 1>}, {transform_indices = @transform_3, window_bounds = array<i64: 64, 8>}]} {
    %c0 = arith.constant 0 : index
    %c0_0 = arith.constant 0 : index
    %0 = vector.load %arg1[%c0, %c0_0] : memref<64x288xbf16, #tpu.memory_space<vmem>>, vector<64x288xbf16>
    %c0_1 = arith.constant 0 : index
    %c0_2 = arith.constant 0 : index
    %1 = vector.load %arg2[%c0_1, %c0_2] : memref<288x8xbf16, #tpu.memory_space<vmem>>, vector<288x8xbf16>
    %cst = arith.constant dense<0.000000e+00> : vector<64x8xf32>
    %2 = tpu.matmul %0, %1, %cst {dimension_numbers = #tpu.dot_dimension_numbers<[1], [0], [0], [1], [0, 0, 1, 1], [], []>} : vector<64x288xbf16>, vector<288x8xbf16>, vector<64x8xf32> -> vector<64x8xf32>
    %c0_3 = arith.constant 0 : index
    %c0_4 = arith.constant 0 : index
    %3 = vector.load %arg3[%c0_3, %c0_4] : memref<64x1xf32, #tpu.memory_space<vmem>>, vector<64x1xf32>
    %4 = vector.broadcast %3 : vector<64x1xf32> to vector<64x8xf32>
    %5 = arith.addf %2, %4 : vector<64x8xf32>
    %cst_5 = arith.constant 0.000000e+00 : f32
    %6 = vector.broadcast %cst_5 : f32 to vector<64x8xf32>
    %7 = arith.maximumf %5, %6 : vector<64x8xf32>
    %c0_6 = arith.constant 0 : index
    %c0_7 = arith.constant 0 : index
    %8 = vector.load %arg4[%c0_6, %c0_7] : memref<64x8xf32, #tpu.memory_space<vmem>>, vector<64x8xf32>
    tpu.vector_store %arg4[%c0_6, %c0_7], %7 {strides = array<i32>} : memref<64x8xf32, #tpu.memory_space<vmem>>, vector<64x8xf32>,
    return
  }
  func.func @transform_0(%arg0: i32) -> (i32, i32) {
    %c0_i32 = arith.constant 0 : i32
    %c0_i32_0 = arith.constant 0 : i32
    %c0_i32_1 = arith.constant 0 : i32
    return %c0_i32, %c0_i32_0 : i32, i32
  }
  func.func @transform_1(%arg0: i32) -> (i32, i32) {
    %c0_i32 = arith.constant 0 : i32
    %c0_i32_0 = arith.constant 0 : i32
    return %c0_i32, %arg0 : i32, i32
  }
  func.func @transform_2(%arg0: i32) -> (i32, i32) {
    %c0_i32 = arith.constant 0 : i32
    %c0_i32_0 = arith.constant 0 : i32
    %c0_i32_1 = arith.constant 0 : i32
    return %c0_i32, %c0_i32_0 : i32, i32
  }
  func.func @transform_3(%arg0: i32) -> (i32, i32) {
    %c0_i32 = arith.constant 0 : i32
    %c0_i32_0 = arith.constant 0 : i32
    return %c0_i32, %arg0 : i32, i32
  }
}

module attributes {stable_mosaic.version = 11 : i64} {
  func.func @_gemm_bias_act_kernel(%arg0: i32, %arg1: memref<128x256xbf16, #tpu.memory_space<vmem>>, %arg2: memref<256x8xbf16, #tpu.memory_space<vmem>>, %arg3: memref<128x1xf32, #tpu.memory_space<vmem>>, %arg4: memref<128x8xf32, #tpu.memory_space<vmem>>) attributes {dimension_semantics = [#tpu.dimension_semantics<parallel>], iteration_bounds = array<i64: 1>, scalar_prefetch = 0 : i64, scratch_operands = 0 : i64, tpu.core_type = #tpu.core_type<tc>, window_params = [{pipeline_mode = #tpu.pipeline_mode<synchronous>, transform_indices = @transform_0, window_bounds = array<i64: 128, 256>}, {transform_indices = @transform_1, window_bounds = array<i64: 256, 8>}, {pipeline_mode = #tpu.pipeline_mode<synchronous>, transform_indices = @transform_2, window_bounds = array<i64: 128, 1>}, {transform_indices = @transform_3, window_bounds = array<i64: 128, 8>}]} {
    %c0 = arith.constant 0 : index
    %c0_0 = arith.constant 0 : index
    %0 = vector.load %arg1[%c0, %c0_0] : memref<128x256xbf16, #tpu.memory_space<vmem>>, vector<128x256xbf16>
    %c0_1 = arith.constant 0 : index
    %c0_2 = arith.constant 0 : index
    %1 = vector.load %arg2[%c0_1, %c0_2] : memref<256x8xbf16, #tpu.memory_space<vmem>>, vector<256x8xbf16>
    %cst = arith.constant dense<0.000000e+00> : vector<128x8xf32>
    %2 = tpu.matmul %0, %1, %cst {dimension_numbers = #tpu.dot_dimension_numbers<[1], [0], [0], [1], [0, 0, 1, 1], [], []>} : vector<128x256xbf16>, vector<256x8xbf16>, vector<128x8xf32> -> vector<128x8xf32>
    %c0_3 = arith.constant 0 : index
    %c0_4 = arith.constant 0 : index
    %3 = vector.load %arg3[%c0_3, %c0_4] : memref<128x1xf32, #tpu.memory_space<vmem>>, vector<128x1xf32>
    %4 = vector.broadcast %3 : vector<128x1xf32> to vector<128x8xf32>
    %5 = arith.addf %2, %4 : vector<128x8xf32>
    %cst_5 = arith.constant 0.000000e+00 : f32
    %6 = vector.broadcast %cst_5 : f32 to vector<128x8xf32>
    %7 = arith.maximumf %5, %6 : vector<128x8xf32>
    %c0_6 = arith.constant 0 : index
    %c0_7 = arith.constant 0 : index
    %8 = vector.load %arg4[%c0_6, %c0_7] : memref<128x8xf32, #tpu.memory_space<vmem>>, vector<128x8xf32>
    tpu.vector_store %arg4[%c0_6, %c0_7], %7 {strides = array<i32>} : memref<128x8xf32, #tpu.memory_space<vmem>>, vector<128x8xf32>,
    return
  }
  func.func @transform_0(%arg0: i32) -> (i32, i32) {
    %c0_i32 = arith.constant 0 : i32
    %c0_i32_0 = arith.constant 0 : i32
    %c0_i32_1 = arith.constant 0 : i32
    return %c0_i32, %c0_i32_0 : i32, i32
  }
  func.func @transform_1(%arg0: i32) -> (i32, i32) {
    %c0_i32 = arith.constant 0 : i32
    %c0_i32_0 = arith.constant 0 : i32
    return %c0_i32, %arg0 : i32, i32
  }
  func.func @transform_2(%arg0: i32) -> (i32, i32) {
    %c0_i32 = arith.constant 0 : i32
    %c0_i32_0 = arith.constant 0 : i32
    %c0_i32_1 = arith.constant 0 : i32
    return %c0_i32, %c0_i32_0 : i32, i32
  }
  func.func @transform_3(%arg0: i32) -> (i32, i32) {
    %c0_i32 = arith.constant 0 : i32
    %c0_i32_0 = arith.constant 0 : i32
    return %c0_i32, %arg0 : i32, i32
  }
}

module attributes {stable_mosaic.version = 11 : i64} {
  func.func @_gemm_bias_act_kernel(%arg0: i32, %arg1: memref<64x128xbf16, #tpu.memory_space<vmem>>, %arg2: memref<128x32xbf16, #tpu.memory_space<vmem>>, %arg3: memref<64x1xf32, #tpu.memory_space<vmem>>, %arg4: memref<64x32xf32, #tpu.memory_space<vmem>>) attributes {dimension_semantics = [#tpu.dimension_semantics<parallel>], iteration_bounds = array<i64: 1>, scalar_prefetch = 0 : i64, scratch_operands = 0 : i64, tpu.core_type = #tpu.core_type<tc>, window_params = [{pipeline_mode = #tpu.pipeline_mode<synchronous>, transform_indices = @transform_0, window_bounds = array<i64: 64, 128>}, {transform_indices = @transform_1, window_bounds = array<i64: 128, 32>}, {pipeline_mode = #tpu.pipeline_mode<synchronous>, transform_indices = @transform_2, window_bounds = array<i64: 64, 1>}, {transform_indices = @transform_3, window_bounds = array<i64: 64, 32>}]} {
    %c0 = arith.constant 0 : index
    %c0_0 = arith.constant 0 : index
    %0 = vector.load %arg1[%c0, %c0_0] : memref<64x128xbf16, #tpu.memory_space<vmem>>, vector<64x128xbf16>
    %c0_1 = arith.constant 0 : index
    %c0_2 = arith.constant 0 : index
    %1 = vector.load %arg2[%c0_1, %c0_2] : memref<128x32xbf16, #tpu.memory_space<vmem>>, vector<128x32xbf16>
    %cst = arith.constant dense<0.000000e+00> : vector<64x32xf32>
    %2 = tpu.matmul %0, %1, %cst {dimension_numbers = #tpu.dot_dimension_numbers<[1], [0], [0], [1], [0, 0, 1, 1], [], []>} : vector<64x128xbf16>, vector<128x32xbf16>, vector<64x32xf32> -> vector<64x32xf32>
    %c0_3 = arith.constant 0 : index
    %c0_4 = arith.constant 0 : index
    %3 = vector.load %arg3[%c0_3, %c0_4] : memref<64x1xf32, #tpu.memory_space<vmem>>, vector<64x1xf32>
    %4 = vector.broadcast %3 : vector<64x1xf32> to vector<64x32xf32>
    %5 = arith.addf %2, %4 : vector<64x32xf32>
    %cst_5 = arith.constant 0.000000e+00 : f32
    %6 = vector.broadcast %cst_5 : f32 to vector<64x32xf32>
    %7 = arith.maximumf %5, %6 : vector<64x32xf32>
    %c0_6 = arith.constant 0 : index
    %c0_7 = arith.constant 0 : index
    %8 = vector.load %arg4[%c0_6, %c0_7] : memref<64x32xf32, #tpu.memory_space<vmem>>, vector<64x32xf32>
    tpu.vector_store %arg4[%c0_6, %c0_7], %7 {strides = array<i32>} : memref<64x32xf32, #tpu.memory_space<vmem>>, vector<64x32xf32>,
    return
  }
  func.func @transform_0(%arg0: i32) -> (i32, i32) {
    %c0_i32 = arith.constant 0 : i32
    %c0_i32_0 = arith.constant 0 : i32
    %c0_i32_1 = arith.constant 0 : i32
    return %c0_i32, %c0_i32_0 : i32, i32
  }
  func.func @transform_1(%arg0: i32) -> (i32, i32) {
    %c0_i32 = arith.constant 0 : i32
    %c0_i32_0 = arith.constant 0 : i32
    return %c0_i32, %arg0 : i32, i32
  }
  func.func @transform_2(%arg0: i32) -> (i32, i32) {
    %c0_i32 = arith.constant 0 : i32
    %c0_i32_0 = arith.constant 0 : i32
    %c0_i32_1 = arith.constant 0 : i32
    return %c0_i32, %c0_i32_0 : i32, i32
  }
  func.func @transform_3(%arg0: i32) -> (i32, i32) {
    %c0_i32 = arith.constant 0 : i32
    %c0_i32_0 = arith.constant 0 : i32
    return %c0_i32, %arg0 : i32, i32
  }
}

module attributes {stable_mosaic.version = 11 : i64} {
  func.func @_gemm_bias_act_kernel(%arg0: i32, %arg1: memref<12x64xbf16, #tpu.memory_space<vmem>>, %arg2: memref<64x128xbf16, #tpu.memory_space<vmem>>, %arg3: memref<12x1xf32, #tpu.memory_space<vmem>>, %arg4: memref<12x128xf32, #tpu.memory_space<vmem>>) attributes {dimension_semantics = [#tpu.dimension_semantics<parallel>], iteration_bounds = array<i64: 1>, scalar_prefetch = 0 : i64, scratch_operands = 0 : i64, tpu.core_type = #tpu.core_type<tc>, window_params = [{pipeline_mode = #tpu.pipeline_mode<synchronous>, transform_indices = @transform_0, window_bounds = array<i64: 12, 64>}, {transform_indices = @transform_1, window_bounds = array<i64: 64, 128>}, {pipeline_mode = #tpu.pipeline_mode<synchronous>, transform_indices = @transform_2, window_bounds = array<i64: 12, 1>}, {transform_indices = @transform_3, window_bounds = array<i64: 12, 128>}]} {
    %c0 = arith.constant 0 : index
    %c0_0 = arith.constant 0 : index
    %0 = vector.load %arg1[%c0, %c0_0] : memref<12x64xbf16, #tpu.memory_space<vmem>>, vector<12x64xbf16>
    %c0_1 = arith.constant 0 : index
    %c0_2 = arith.constant 0 : index
    %1 = vector.load %arg2[%c0_1, %c0_2] : memref<64x128xbf16, #tpu.memory_space<vmem>>, vector<64x128xbf16>
    %cst = arith.constant dense<0.000000e+00> : vector<12x128xf32>
    %2 = tpu.matmul %0, %1, %cst {dimension_numbers = #tpu.dot_dimension_numbers<[1], [0], [0], [1], [0, 0, 1, 1], [], []>} : vector<12x64xbf16>, vector<64x128xbf16>, vector<12x128xf32> -> vector<12x128xf32>
    %c0_3 = arith.constant 0 : index
    %c0_4 = arith.constant 0 : index
    %3 = vector.load %arg3[%c0_3, %c0_4] : memref<12x1xf32, #tpu.memory_space<vmem>>, vector<12x1xf32>
    %4 = vector.broadcast %3 : vector<12x1xf32> to vector<12x128xf32>
    %5 = arith.addf %2, %4 : vector<12x128xf32>
    %cst_5 = arith.constant 0.000000e+00 : f32
    %6 = vector.broadcast %cst_5 : f32 to vector<12x128xf32>
    %7 = arith.subf %6, %5 : vector<12x128xf32>
    %8 = math.exp %7 : vector<12x128xf32>
    %cst_6 = arith.constant 1.000000e+00 : f32
    %9 = vector.broadcast %cst_6 : f32 to vector<12x128xf32>
    %10 = arith.addf %9, %8 : vector<12x128xf32>
    %11 = tpu.reciprocal %10 {approx = true} : vector<12x128xf32> -> vector<12x128xf32>
    %cst_7 = arith.constant 0.000000e+00 : f32
    %cst_8 = arith.constant 1.000000e+00 : f32
    %12 = vector.broadcast %cst_7 : f32 to vector<12x128xf32>
    %13 = arith.maximumf %12, %11 : vector<12x128xf32>
    %14 = vector.broadcast %cst_8 : f32 to vector<12x128xf32>
    %15 = arith.minimumf %14, %13 : vector<12x128xf32>
    %c0_9 = arith.constant 0 : index
    %c0_10 = arith.constant 0 : index
    %16 = vector.load %arg4[%c0_9, %c0_10] : memref<12x128xf32, #tpu.memory_space<vmem>>, vector<12x128xf32>
    tpu.vector_store %arg4[%c0_9, %c0_10], %15 {strides = array<i32>} : memref<12x128xf32, #tpu.memory_space<vmem>>, vector<12x128xf32>,
    return
  }
  func.func @transform_0(%arg0: i32) -> (i32, i32) {
    %c0_i32 = arith.constant 0 : i32
    %c0_i32_0 = arith.constant 0 : i32
    %c0_i32_1 = arith.constant 0 : i32
    return %c0_i32, %c0_i32_0 : i32, i32
  }
  func.func @transform_1(%arg0: i32) -> (i32, i32) {
    %c0_i32 = arith.constant 0 : i32
    %c0_i32_0 = arith.constant 0 : i32
    return %c0_i32, %arg0 : i32, i32
  }
  func.func @transform_2(%arg0: i32) -> (i32, i32) {
    %c0_i32 = arith.constant 0 : i32
    %c0_i32_0 = arith.constant 0 : i32
    %c0_i32_1 = arith.constant 0 : i32
    return %c0_i32, %c0_i32_0 : i32, i32
  }
  func.func @transform_3(%arg0: i32) -> (i32, i32) {
    %c0_i32 = arith.constant 0 : i32
    %c0_i32_0 = arith.constant 0 : i32
    return %c0_i32, %arg0 : i32, i32
  }
}

</mosaic_0001>

<llo_original>
// kernel: tile.22
$region0: #{tile.22}
  #allocation0 [shape = 's32[1]{0}', space=sflag, size = 0x4, scoped, tag = 'scoped memory for tile.22']
  %s0 = inlined_call_operand.vmem [shape: f32[3], index: 0, kind: input, shape index: {}]
  %s1 = inlined_call_operand.vmem [shape: f32[4,1,1,3], index: 1, kind: output, shape index: {}]
  // Predicated region
  $region2: #{tile.22} parent=0 // pred_check
    _
  $region3: #{tile.22} parent=0 // pred_check_branch
    %3 = sbr.rel (0) target = $region5
  $region4: #{tile.22} parent=0 // pred_region
    _
  $region5: #{tile.22} parent=0 // pred_fallthru
    _
  %v4 = vld [vmem:[%s0] ss:$0 sm:$0xff]
  %5 = vst [vmem:[%s1] sm:$0xf] %v4

// kernel: tile.2
$region0: #{tile.2}
  %s0 = inlined_call_operand.vmem [shape: f32[4,1,1,3], index: 0, kind: input, shape index: {}]
  %s1 = inlined_call_operand.vmem [shape: f32[12,1], index: 1, kind: output, shape index: {}]
  $region1: #{tile.2} parent=0
    #allocation0 [shape = 'u8[4096]{0}', space=vmem, size = 0x1000, scoped, tag = 'scoped mem for input reshape']
    %s3 = sshll.u32 1, 4
    %s4 = ssub.s32 %s3, 1
    %v5 = vld [vmem:[%s0] sm:%s4]
    %6 = vst [vmem:[#allocation0] sm:%s4] %v5
    %v7 = vld [vmem:[#allocation0] sm:$0xf]
    %vm8 = vcmask 7168
    %9 = vst.msk [vmem:[%s1] ss:$3 sm:$0xf] %vm8, %v7
    %v10 = vld [vmem:[#allocation0] sm:$0xf]
    %11 = vrot.lane.b32.xlu0 %v10, 127
    %v12 = vpop.permute.xlu0 %11
    %vm13 = vcmask 7168
    %s14 = scalar_lea.vmem %s1, 1
    %15 = vst.msk [vmem:[%s14] ss:$3 sm:$0xf] %vm13, %v12
    %v16 = vld [vmem:[#allocation0] sm:$0xf]
    %17 = vrot.lane.b32.xlu0 %v16, 126
    %v18 = vpop.permute.xlu0 %17
    %vm19 = vcmask 7168
    %s20 = scalar_lea.vmem %s1, 2
    %21 = vst.msk [vmem:[%s20] ss:$3 sm:$0xf] %vm19, %v18

// kernel: tile.14
$region0: #{tile.14}
  #allocation2 [shape = 's32[1]{0}', space=sflag, size = 0x4, scoped, tag = 'scoped memory for tile.14']
  %s0 = inlined_call_operand.hbm [shape: f32[32], index: 0, kind: input, shape index: {}]
  %s1 = inlined_call_operand.vmem [shape: f32[4,1,1,32], index: 1, kind: output, shape index: {}]
  $region1: #{tile.14} parent=0
    #allocation0 [shape = 'u8[512]{0}', space=vmem, size = 0x400, scoped, tag = 'operand span for operand 0']
    #allocation1 [shape = 's32[1]{0}', space=sflag, size = 0x4, scoped, tag = 'scoped memory for tile.14']
    %2 = vsyncpa [#allocation1], 0
    // Predicated region
    $region2: #{tile.14} parent=1 // pred_check
      _
    $region3: #{tile.14} parent=1 // pred_check_branch
      %4 = sbr.rel (0) target = $region5
    $region4: #{tile.14} parent=1 // pred_region
      %s6 = ssub.s32 16, 16
      %7 = vsyncadd [#allocation1], %s6
      %s9 = sshll.u32 [#allocation0], 4
      %s10 = int_to_ptr.vmem [resolvable:$true] %s9
      %12 = dma.hbm_to_vmem [thread:$0]  %s0, 16, %s10, [#allocation1]
    $region5: #{tile.14} parent=1 // pred_fallthru
      _
    // Predicated region
    $region6: #{tile.14} parent=1 // pred_check
      _
    $region7: #{tile.14} parent=1 // pred_check_branch
      %14 = sbr.rel (0) target = $region9
    $region8: #{tile.14} parent=1 // pred_region
      %15 = dma.done [#allocation1], 16
    $region9: #{tile.14} parent=1 // pred_fallthru
      _
    %v16 = vld [vmem:[#allocation0] ss:$0 sm:$0xff]
    %17 = vst [vmem:[%s1] sm:$0xf] %v16
    %18 = vsyncpa [#allocation1], 1

// kernel: tile.18
$region0: #{tile.18}
  #allocation2 [shape = 's32[1]{0}', space=sflag, size = 0x4, scoped, tag = 'scoped memory for tile.18']
  %s0 = inlined_call_operand.hbm [shape: f32[16], index: 0, kind: input, shape index: {}]
  %s1 = inlined_call_operand.vmem [shape: f32[4,1,1,16], index: 1, kind: output, shape index: {}]
  $region1: #{tile.18} parent=0
    #allocation0 [shape = 'u8[512]{0}', space=vmem, size = 0x400, scoped, tag = 'operand span for operand 0']
    #allocation1 [shape = 's32[1]{0}', space=sflag, size = 0x4, scoped, tag = 'scoped memory for tile.18']
    %2 = vsyncpa [#allocation1], 0
    // Predicated region
    $region2: #{tile.18} parent=1 // pred_check
      _
    $region3: #{tile.18} parent=1 // pred_check_branch
      %4 = sbr.rel (0) target = $region5
    $region4: #{tile.18} parent=1 // pred_region
      %s6 = ssub.s32 16, 16
      %7 = vsyncadd [#allocation1], %s6
      %s9 = sshll.u32 [#allocation0], 4
      %s10 = int_to_ptr.vmem [resolvable:$true] %s9
      %12 = dma.hbm_to_vmem [thread:$0]  %s0, 16, %s10, [#allocation1]
    $region5: #{tile.18} parent=1 // pred_fallthru
      _
    // Predicated region
    $region6: #{tile.18} parent=1 // pred_check
      _
    $region7: #{tile.18} parent=1 // pred_check_branch
      %14 = sbr.rel (0) target = $region9
    $region8: #{tile.18} parent=1 // pred_region
      %15 = dma.done [#allocation1], 16
    $region9: #{tile.18} parent=1 // pred_fallthru
      _
    %v16 = vld [vmem:[#allocation0] ss:$0 sm:$0xff]
    %17 = vst [vmem:[%s1] sm:$0xf] %v16
    %18 = vsyncpa [#allocation1], 1

// kernel: tile.1
$region0: #{tile.1}
  %s0 = inlined_call_operand.vmem [shape: f32[4,1,1,16], index: 0, kind: input, shape index: {}]
  %s1 = inlined_call_operand.vmem [shape: f32[64,1], index: 1, kind: output, shape index: {}]
  $region1: #{tile.1} parent=0
    #allocation0 [shape = 'u8[4096]{0}', space=vmem, size = 0x1000, scoped, tag = 'scoped mem for input reshape']
    %s3 = sshll.u32 1, 4
    %s4 = ssub.s32 %s3, 1
    %v5 = vld [vmem:[%s0] sm:%s4]
    %6 = vst [vmem:[#allocation0] sm:%s4] %v5
    %v7 = vld [vmem:[#allocation0] sm:$0xf]
    %vm8 = vcmask 7168
    %9 = vst.msk [vmem:[%s1] ss:$16 sm:$0x3] %vm8, %v7
    %10 = vst.msk [vmem:[%s1] ss:$16 sm:$0xc] %vm8, %v7
    %v11 = vld [vmem:[#allocation0] sm:$0xf]
    %12 = vrot.lane.b32.xlu0 %v11, 127
    %v13 = vpop.permute.xlu0 %12
    %vm14 = vcmask 7168
    %s15 = scalar_lea.vmem %s1, 1
    %16 = vst.msk [vmem:[%s15] ss:$16 sm:$0x3] %vm14, %v13
    %s17 = scalar_lea.vmem %s1, 1
    %18 = vst.msk [vmem:[%s17] ss:$16 sm:$0xc] %vm14, %v13
    %v19 = vld [vmem:[#allocation0] sm:$0xf]
    %20 = vrot.lane.b32.xlu0 %v19, 126
    %v21 = vpop.permute.xlu0 %20
    %vm22 = vcmask 7168
    %s23 = scalar_lea.vmem %s1, 2
    %24 = vst.msk [vmem:[%s23] ss:$16 sm:$0x3] %vm22, %v21
    %s25 = scalar_lea.vmem %s1, 2
    %26 = vst.msk [vmem:[%s25] ss:$16 sm:$0xc] %vm22, %v21
    %v27 = vld [vmem:[#allocation0] sm:$0xf]
    %28 = vrot.lane.b32.xlu0 %v27, 125
    %v29 = vpop.permute.xlu0 %28
    %vm30 = vcmask 7168
    %s31 = scalar_lea.vmem %s1, 3
    %32 = vst.msk [vmem:[%s31] ss:$16 sm:$0x3] %vm30, %v29
    %s33 = scalar_lea.vmem %s1, 3
    %34 = vst.msk [vmem:[%s33] ss:$16 sm:$0xc] %vm30, %v29
    %v35 = vld [vmem:[#allocation0] sm:$0xf]
    %36 = vrot.lane.b32.xlu0 %v35, 124
    %v37 = vpop.permute.xlu0 %36
    %vm38 = vcmask 7168
    %s39 = scalar_lea.vmem %s1, 4
    %40 = vst.msk [vmem:[%s39] ss:$16 sm:$0x3] %vm38, %v37
    %s41 = scalar_lea.vmem %s1, 4
    %42 = vst.msk [vmem:[%s41] ss:$16 sm:$0xc] %vm38, %v37
    %v43 = vld [vmem:[#allocation0] sm:$0xf]
    %44 = vrot.lane.b32.xlu0 %v43, 123
    %v45 = vpop.permute.xlu0 %44
    %vm46 = vcmask 7168
    %s47 = scalar_lea.vmem %s1, 5
    %48 = vst.msk [vmem:[%s47] ss:$16 sm:$0x3] %vm46, %v45
    %s49 = scalar_lea.vmem %s1, 5
    %50 = vst.msk [vmem:[%s49] ss:$16 sm:$0xc] %vm46, %v45
    %v51 = vld [vmem:[#allocation0] sm:$0xf]
    %52 = vrot.lane.b32.xlu0 %v51, 122
    %v53 = vpop.permute.xlu0 %52
    %vm54 = vcmask 7168
    %s55 = scalar_lea.vmem %s1, 6
    %56 = vst.msk [vmem:[%s55] ss:$16 sm:$0x3] %vm54, %v53
    %s57 = scalar_lea.vmem %s1, 6
    %58 = vst.msk [vmem:[%s57] ss:$16 sm:$0xc] %vm54, %v53
    %v59 = vld [vmem:[#allocation0] sm:$0xf]
    %60 = vrot.lane.b32.xlu0 %v59, 121
    %v61 = vpop.permute.xlu0 %60
    %vm62 = vcmask 7168
    %s63 = scalar_lea.vmem %s1, 7
    %64 = vst.msk [vmem:[%s63] ss:$16 sm:$0x3] %vm62, %v61
    %s65 = scalar_lea.vmem %s1, 7
    %66 = vst.msk [vmem:[%s65] ss:$16 sm:$0xc] %vm62, %v61
    %v67 = vld [vmem:[#allocation0] sm:$0xf]
    %68 = vrot.lane.b32.xlu0 %v67, 120
    %v69 = vpop.permute.xlu0 %68
    %vm70 = vcmask 7168
    %s71 = scalar_lea.vmem %s1, 8
    %72 = vst.msk [vmem:[%s71] ss:$16 sm:$0x3] %vm70, %v69
    %s73 = scalar_lea.vmem %s1, 8
    %74 = vst.msk [vmem:[%s73] ss:$16 sm:$0xc] %vm70, %v69
    %v75 = vld [vmem:[#allocation0] sm:$0xf]
    %76 = vrot.lane.b32.xlu0 %v75, 119
    %v77 = vpop.permute.xlu0 %76
    %vm78 = vcmask 7168
    %s79 = scalar_lea.vmem %s1, 9
    %80 = vst.msk [vmem:[%s79] ss:$16 sm:$0x3] %vm78, %v77
    %s81 = scalar_lea.vmem %s1, 9
    %82 = vst.msk [vmem:[%s81] ss:$16 sm:$0xc] %vm78, %v77
    %v83 = vld [vmem:[#allocation0] sm:$0xf]
    %84 = vrot.lane.b32.xlu0 %v83, 118
    %v85 = vpop.permute.xlu0 %84
    %vm86 = vcmask 7168
    %s87 = scalar_lea.vmem %s1, 10
    %88 = vst.msk [vmem:[%s87] ss:$16 sm:$0x3] %vm86, %v85
    %s89 = scalar_lea.vmem %s1, 10
    %90 = vst.msk [vmem:[%s89] ss:$16 sm:$0xc] %vm86, %v85
    %v91 = vld [vmem:[#allocation0] sm:$0xf]
    %92 = vrot.lane.b32.xlu0 %v91, 117
    %v93 = vpop.permute.xlu0 %92
    %vm94 = vcmask 7168
    %s95 = scalar_lea.vmem %s1, 11
    %96 = vst.msk [vmem:[%s95] ss:$16 sm:$0x3] %vm94, %v93
    %s97 = scalar_lea.vmem %s1, 11
    %98 = vst.msk [vmem:[%s97] ss:$16 sm:$0xc] %vm94, %v93
    %v99 = vld [vmem:[#allocation0] sm:$0xf]
    %100 = vrot.lane.b32.xlu0 %v99, 116
    %v101 = vpop.permute.xlu0 %100
    %vm102 = vcmask 7168
    %s103 = scalar_lea.vmem %s1, 12
    %104 = vst.msk [vmem:[%s103] ss:$16 sm:$0x3] %vm102, %v101
    %s105 = scalar_lea.vmem %s1, 12
    %106 = vst.msk [vmem:[%s105] ss:$16 sm:$0xc] %vm102, %v101
    %v107 = vld [vmem:[#allocation0] sm:$0xf]
    %108 = vrot.lane.b32.xlu0 %v107, 115
    %v109 = vpop.permute.xlu0 %108
    %vm110 = vcmask 7168
    %s111 = scalar_lea.vmem %s1, 13
    %112 = vst.msk [vmem:[%s111] ss:$16 sm:$0x3] %vm110, %v109
    %s113 = scalar_lea.vmem %s1, 13
    %114 = vst.msk [vmem:[%s113] ss:$16 sm:$0xc] %vm110, %v109
    %v115 = vld [vmem:[#allocation0] sm:$0xf]
    %116 = vrot.lane.b32.xlu0 %v115, 114
    %v117 = vpop.permute.xlu0 %116
    %vm118 = vcmask 7168
    %s119 = scalar_lea.vmem %s1, 14
    %120 = vst.msk [vmem:[%s119] ss:$16 sm:$0x3] %vm118, %v117
    %s121 = scalar_lea.vmem %s1, 14
    %122 = vst.msk [vmem:[%s121] ss:$16 sm:$0xc] %vm118, %v117
    %v123 = vld [vmem:[#allocation0] sm:$0xf]
    %124 = vrot.lane.b32.xlu0 %v123, 113
    %v125 = vpop.permute.xlu0 %124
    %vm126 = vcmask 7168
    %s127 = scalar_lea.vmem %s1, 15
    %128 = vst.msk [vmem:[%s127] ss:$16 sm:$0x3] %vm126, %v125
    %s129 = scalar_lea.vmem %s1, 15
    %130 = vst.msk [vmem:[%s129] ss:$16 sm:$0xc] %vm126, %v125

// kernel: autoencoder_forward.6
$region0: #{autoencoder_forward.6}
  #allocation0 [shape = 'u32[]', space=smem, size = 0x4, offset = 0x4, fixed_abs, tag = 'smem constant byte address 0x4 - core index']
  #allocation1 [shape = 'u32[144,128]{1,0:T(1,128)}', space=vmem, size = 0x12000, scoped, tag = 'internal scratch']
  %s0 = inlined_call_operand.vmem [shape: bf16[16,27], index: 0, kind: input, shape index: {}]
  %s1 = inlined_call_operand.vmem [shape: bf16[27,128], index: 1, kind: input, shape index: {}]
  %s2 = inlined_call_operand.vmem [shape: f32[16,1], index: 2, kind: input, shape index: {}]
  %s3 = inlined_call_operand.vmem [shape: f32[16,128], index: 3, kind: output, shape index: {}]
  %s4 = sld [smem:[#allocation0]]
  $region22: #{autoencoder_forward.6} parent=0
    _
  %s6 = ssub.s32 1, %s4
  %s7 = scalar_select 0, %s6, %s4
  // Predicated region
  $region2: #{autoencoder_forward.6} parent=0 // pred_check
    _
  $region3: #{autoencoder_forward.6} parent=0 // pred_check_branch
    %9 = sbr.rel (0) target = $region5
  $region4: #{autoencoder_forward.6} parent=0 // pred_region
    _
  $region5: #{autoencoder_forward.6} parent=0 // pred_fallthru
    _
  // Predicated region
  $region6: #{autoencoder_forward.6} parent=0 // pred_check
    _
  $region7: #{autoencoder_forward.6} parent=0 // pred_check_branch
    %11 = sbr.rel (0) target = $region9
  $region8: #{autoencoder_forward.6} parent=0 // pred_region
    _
  $region9: #{autoencoder_forward.6} parent=0 // pred_fallthru
    _
  // Predicated region
  $region10: #{autoencoder_forward.6} parent=0 // pred_check
    _
  $region11: #{autoencoder_forward.6} parent=0 // pred_check_branch
    %13 = sbr.rel (0) target = $region13
  $region12: #{autoencoder_forward.6} parent=0 // pred_region
    _
  $region13: #{autoencoder_forward.6} parent=0 // pred_fallthru
    _
  %v15 = vld [vmem:[%s0] sm:$0xf]
  %v16 = vld [vmem:[%s0 + $0x4] sm:$0xf]
  %v17 = vld [vmem:[%s1] sm:$0xf]
  %v18 = vld [vmem:[%s1 + $0x4] sm:$0xf]
  %v19 = vld [vmem:[%s1 + $0x8] sm:$0xf]
  %v20 = vld [vmem:[%s1 + $0xc] sm:$0x3]
  %v21 = vld [vmem:[%s2] sm:$0xff]
  %v22 = vld [vmem:[%s2 + $0x8] sm:$0xff]
  %24 = vset.pattern.permute.xlu0 0
  %25 = vperm.xlu0 %24, %v21
  %v26 = vpop.permute.xlu0 %25
  %29 = vset.pattern.permute.xlu0 0
  %30 = vperm.xlu0 %29, %v22
  %v31 = vpop.permute.xlu0 %30
  %v35 = vunpack.c.l.b16 %v15
  %v36 = vunpack.c.l.b16 %v16
  %v37 = vpack.c.b16 %v36, %v35
  %v42 = vunpack.c.l.b16 %v17
  %v43 = vunpack.c.l.b16 %v18
  %v44 = vunpack.c.l.b16 %v19
  %v45 = vunpack.c.l.b16 %v20
  %v46 = vpack.c.b16 %v43, %v42
  %v47 = vpack.c.b16 %v45, %v44
  %vm49 = vcmask 220160
  %v51 = vsel %vm49, %v37, 0
  %vm53 = vcmask 1044480
  %vm54 = vcmask 1045504
  %v55 = vsel %vm53, 4294967295, 65535
  %v56 = vsel %vm54, %v55, 0
  %v58 = vand.u32 %v47, %v56
  %60 = vmatprep.subr.bf16.mxu0 0
  %61 = vmatpush1.bf16.msra.mxu0 0
  %62 = vmatprep.subr.bf16.mxu0 0
  %63 = vmatpush1.bf16.msra.mxu0 0
  %64 = vmatprep.subr.bf16.mxu0 0
  %65 = vmatpush1.bf16.msra.mxu0 0
  %66 = vmatprep.subr.bf16.mxu0 0
  %67 = vmatpush1.bf16.msra.mxu0 0
  %68 = vmatprep.subr.bf16.mxu0 0
  %69 = vmatpush1.bf16.msra.mxu0 0
  %70 = vmatprep.subr.bf16.mxu0 0
  %71 = vmatpush1.bf16.msra.mxu0 0
  %72 = vmatprep.subr.bf16.mxu0 0
  %73 = vmatpush1.bf16.msra.mxu0 %v58
  %74 = vmatprep.subr.bf16.mxu0 0
  %75 = vmatpush1.bf16.msra.mxu0 %v46
  %76 = vmatprep.subr.bf16.mxu0 0
  %77 = vmatpush2.bf16.msra.mxu0 0
  %78 = vmatprep.subr.bf16.mxu0 0
  %79 = vmatpush2.bf16.msra.mxu0 0
  %80 = vmatprep.subr.bf16.mxu0 0
  %81 = vmatpush2.bf16.msra.mxu0 0
  %82 = vmatprep.subr.bf16.mxu0 0
  %83 = vmatpush2.bf16.msra.mxu0 0
  %84 = vmatprep.subr.bf16.mxu0 0
  %85 = vmatpush2.bf16.msra.mxu0 0
  %86 = vmatprep.subr.bf16.mxu0 0
  %87 = vmatpush2.bf16.msra.mxu0 0
  %88 = vmatprep.subr.bf16.mxu0 0
  %89 = vmatpush2.bf16.msra.mxu0 0
  %90 = vmatprep.subr.bf16.mxu0 0
  %91 = vmatpush2.bf16.msra.mxu0 0
  %92 = vmatprep.mubr.bf16.mxu0 0
  %93 = vmatmul.mubr.bf16.gmra.mxu0 %v51
  %v94 = vpop.f32.mrf.mxu0
  %v95 = vadd.f32 %v26, %v94
  %v96 = vpop.f32.mrf.mxu0
  %v97 = vpop.f32.mrf.mxu0
  %v98 = vadd.f32 %v31, %v97
  %v99 = vpop.f32.mrf.mxu0
  %100 = vdwg.mxu0
  %v101 = vmax.f32 %v95, 0.0
  %v102 = vmax.f32 %v98, 0.0
  %103 = vst [vmem:[%s3] sm:$0xff] %v101
  %104 = vst [vmem:[%s3 + $0x8] sm:$0xff] %v102
  // Predicated region
  $region14: #{autoencoder_forward.6} parent=0 // pred_check
    _
  $region15: #{autoencoder_forward.6} parent=0 // pred_check_branch
    %106 = sbr.rel (0) target = $region17
  $region16: #{autoencoder_forward.6} parent=0 // pred_region
    _
  $region17: #{autoencoder_forward.6} parent=0 // pred_fallthru
    _
  // Predicated region
  $region18: #{autoencoder_forward.6} parent=0 // pred_check
    _
  $region19: #{autoencoder_forward.6} parent=0 // pred_check_branch
    %108 = sbr.rel (0) target = $region21
  $region20: #{autoencoder_forward.6} parent=0 // pred_region
    _
  $region21: #{autoencoder_forward.6} parent=0 // pred_fallthru
    _

// kernel: autoencoder_forward.7
$region0: #{autoencoder_forward.7}
  #allocation0 [shape = 'u32[]', space=smem, size = 0x4, offset = 0x4, fixed_abs, tag = 'smem constant byte address 0x4 - core index']
  #allocation1 [shape = 'u32[144,128]{1,0:T(1,128)}', space=vmem, size = 0x12000, scoped, tag = 'internal scratch']
  %s0 = inlined_call_operand.vmem [shape: bf16[32,144], index: 0, kind: input, shape index: {}]
  %s1 = inlined_call_operand.vmem [shape: bf16[144,32], index: 1, kind: input, shape index: {}]
  %s2 = inlined_call_operand.vmem [shape: f32[32,1], index: 2, kind: input, shape index: {}]
  %s3 = inlined_call_operand.vmem [shape: f32[32,32], index: 3, kind: output, shape index: {}]
  %s4 = sld [smem:[#allocation0]]
  $region22: #{autoencoder_forward.7} parent=0
    _
  %s6 = ssub.s32 1, %s4
  %s7 = scalar_select 0, %s6, %s4
  // Predicated region
  $region2: #{autoencoder_forward.7} parent=0 // pred_check
    _
  $region3: #{autoencoder_forward.7} parent=0 // pred_check_branch
    %9 = sbr.rel (0) target = $region5
  $region4: #{autoencoder_forward.7} parent=0 // pred_region
    _
  $region5: #{autoencoder_forward.7} parent=0 // pred_fallthru
    _
  // Predicated region
  $region6: #{autoencoder_forward.7} parent=0 // pred_check
    _
  $region7: #{autoencoder_forward.7} parent=0 // pred_check_branch
    %11 = sbr.rel (0) target = $region9
  $region8: #{autoencoder_forward.7} parent=0 // pred_region
    _
  $region9: #{autoencoder_forward.7} parent=0 // pred_fallthru
    _
  // Predicated region
  $region10: #{autoencoder_forward.7} parent=0 // pred_check
    _
  $region11: #{autoencoder_forward.7} parent=0 // pred_check_branch
    %13 = sbr.rel (0) target = $region13
  $region12: #{autoencoder_forward.7} parent=0 // pred_region
    _
  $region13: #{autoencoder_forward.7} parent=0 // pred_fallthru
    _
  %v15 = vld [vmem:[%s0] sm:$0xff]
  %v16 = vld [vmem:[%s0 + $0x8] sm:$0xff]
  %v17 = vld [vmem:[%s0 + $0x10] sm:$0xff]
  %v18 = vld [vmem:[%s0 + $0x18] sm:$0xff]
  %v19 = vld [vmem:[%s1] sm:$0xf]
  %v20 = vld [vmem:[%s1 + $0x4] sm:$0xf]
  %v21 = vld [vmem:[%s1 + $0x8] sm:$0xf]
  %v22 = vld [vmem:[%s1 + $0xc] sm:$0xf]
  %v23 = vld [vmem:[%s1 + $0x10] sm:$0xf]
  %v24 = vld [vmem:[%s1 + $0x14] sm:$0xf]
  %v25 = vld [vmem:[%s1 + $0x18] sm:$0xf]
  %v26 = vld [vmem:[%s1 + $0x1c] sm:$0xf]
  %v27 = vld [vmem:[%s1 + $0x20] sm:$0xf]
  %v28 = vld [vmem:[%s1 + $0x24] sm:$0xf]
  %v29 = vld [vmem:[%s1 + $0x28] sm:$0xf]
  %v30 = vld [vmem:[%s1 + $0x2c] sm:$0xf]
  %v31 = vld [vmem:[%s1 + $0x30] sm:$0xf]
  %v32 = vld [vmem:[%s1 + $0x34] sm:$0xf]
  %v33 = vld [vmem:[%s1 + $0x38] sm:$0xf]
  %v34 = vld [vmem:[%s1 + $0x3c] sm:$0xf]
  %v35 = vld [vmem:[%s1 + $0x40] sm:$0xf]
  %v36 = vld [vmem:[%s1 + $0x44] sm:$0xf]
  %v37 = vld [vmem:[%s2] sm:$0xff]
  %v38 = vld [vmem:[%s2 + $0x8] sm:$0xff]
  %v39 = vld [vmem:[%s2 + $0x10] sm:$0xff]
  %v40 = vld [vmem:[%s2 + $0x18] sm:$0xff]
  %42 = vset.pattern.permute.xlu0 0
  %43 = vperm.xlu0 %42, %v37
  %v44 = vpop.permute.xlu0 %43
  %47 = vset.pattern.permute.xlu0 0
  %48 = vperm.xlu0 %47, %v38
  %v49 = vpop.permute.xlu0 %48
  %52 = vset.pattern.permute.xlu0 0
  %53 = vperm.xlu0 %52, %v39
  %v54 = vpop.permute.xlu0 %53
  %57 = vset.pattern.permute.xlu0 0
  %58 = vperm.xlu0 %57, %v40
  %v59 = vpop.permute.xlu0 %58
  %v65 = vunpack.c.l.b16 %v15
  %v66 = vunpack.c.h.b16 %v15
  %v67 = vunpack.c.l.b16 %v16
  %v68 = vunpack.c.h.b16 %v16
  %v69 = vunpack.c.l.b16 %v17
  %v70 = vunpack.c.h.b16 %v17
  %v71 = vunpack.c.l.b16 %v18
  %v72 = vunpack.c.h.b16 %v18
  %v73 = vpack.c.b16 %v67, %v65
  %v74 = vpack.c.b16 %v68, %v66
  %v75 = vpack.c.b16 %v71, %v69
  %v76 = vpack.c.b16 %v72, %v70
  %v97 = vunpack.c.l.b16 %v19
  %v98 = vunpack.c.l.b16 %v20
  %v99 = vunpack.c.l.b16 %v21
  %v100 = vunpack.c.l.b16 %v22
  %v101 = vunpack.c.l.b16 %v23
  %v102 = vunpack.c.l.b16 %v24
  %v103 = vunpack.c.l.b16 %v25
  %v104 = vunpack.c.l.b16 %v26
  %v105 = vunpack.c.l.b16 %v27
  %v106 = vunpack.c.l.b16 %v28
  %v107 = vunpack.c.l.b16 %v29
  %v108 = vunpack.c.l.b16 %v30
  %v109 = vunpack.c.l.b16 %v31
  %v110 = vunpack.c.l.b16 %v32
  %v111 = vunpack.c.l.b16 %v33
  %v112 = vunpack.c.l.b16 %v34
  %v113 = vunpack.c.l.b16 %v35
  %v114 = vunpack.c.l.b16 %v36
  %v115 = vpack.c.b16 %v98, %v97
  %v116 = vpack.c.b16 %v100, %v99
  %v117 = vpack.c.b16 %v102, %v101
  %v118 = vpack.c.b16 %v104, %v103
  %v119 = vpack.c.b16 %v106, %v105
  %v120 = vpack.c.b16 %v108, %v107
  %v121 = vpack.c.b16 %v110, %v109
  %v122 = vpack.c.b16 %v112, %v111
  %v123 = vpack.c.b16 %v114, %v113
  %vm133 = vcmask 130048
  %v135 = vsel %vm133, %v74, 0
  %v138 = vsel %vm133, %v76, 0
  %140 = vmatprep.subr.bf16.mxu0 0
  %141 = vmatpush1.bf16.msra.mxu0 %v122
  %142 = vmatprep.subr.bf16.mxu0 0
  %143 = vmatpush1.bf16.msra.mxu0 %v121
  %144 = vmatprep.subr.bf16.mxu0 0
  %145 = vmatpush1.bf16.msra.mxu0 %v120
  %146 = vmatprep.subr.bf16.mxu0 0
  %147 = vmatpush1.bf16.msra.mxu0 %v119
  %148 = vmatprep.subr.bf16.mxu0 0
  %149 = vmatpush1.bf16.msra.mxu0 %v118
  %150 = vmatprep.subr.bf16.mxu0 0
  %151 = vmatpush1.bf16.msra.mxu0 %v117
  %152 = vmatprep.subr.bf16.mxu0 0
  %153 = vmatpush1.bf16.msra.mxu0 %v116
  %154 = vmatprep.subr.bf16.mxu0 0
  %155 = vmatpush1.bf16.msra.mxu0 %v115
  %156 = vmatprep.subr.bf16.mxu0 0
  %157 = vmatpush2.bf16.msra.mxu0 0
  %158 = vmatprep.subr.bf16.mxu0 0
  %159 = vmatpush2.bf16.msra.mxu0 0
  %160 = vmatprep.subr.bf16.mxu0 0
  %161 = vmatpush2.bf16.msra.mxu0 0
  %162 = vmatprep.subr.bf16.mxu0 0
  %163 = vmatpush2.bf16.msra.mxu0 0
  %164 = vmatprep.subr.bf16.mxu0 0
  %165 = vmatpush2.bf16.msra.mxu0 0
  %166 = vmatprep.subr.bf16.mxu0 0
  %167 = vmatpush2.bf16.msra.mxu0 0
  %168 = vmatprep.subr.bf16.mxu0 0
  %169 = vmatpush2.bf16.msra.mxu0 0
  %170 = vmatprep.subr.bf16.mxu0 0
  %171 = vmatpush2.bf16.msra.mxu0 %v123
  %172 = vmatprep.mubr.bf16.mxu0 %v135
  %173 = vmatmul.mubr.bf16.gmra.mxu0 %v73
  %v174 = vpop.f32.mrf.mxu0
  %v175 = vadd.f32 %v44, %v174
  %v176 = vpop.f32.mrf.mxu0
  %v177 = vpop.f32.mrf.mxu0
  %v178 = vadd.f32 %v49, %v177
  %v179 = vpop.f32.mrf.mxu0
  %180 = vmatprep.mubr.bf16.mxu0 %v138
  %181 = vmatmul.mubr.bf16.gmra.mxu0 %v75
  %v182 = vpop.f32.mrf.mxu0
  %v183 = vadd.f32 %v54, %v182
  %v184 = vpop.f32.mrf.mxu0
  %v185 = vpop.f32.mrf.mxu0
  %v186 = vadd.f32 %v59, %v185
  %v187 = vpop.f32.mrf.mxu0
  %188 = vdwg.mxu0
  %v189 = vmax.f32 %v175, 0.0
  %v190 = vmax.f32 %v178, 0.0
  %v191 = vmax.f32 %v183, 0.0
  %v192 = vmax.f32 %v186, 0.0
  %vm193 = vcmask 261120
  %194 = vst.msk [vmem:[%s3] sm:$0xff] %vm193, %v189
  %195 = vst.msk [vmem:[%s3 + $0x8] sm:$0xff] %vm193, %v190
  %196 = vst.msk [vmem:[%s3 + $0x10] sm:$0xff] %vm193, %v191
  %197 = vst.msk [vmem:[%s3 + $0x18] sm:$0xff] %vm193, %v192
  // Predicated region
  $region14: #{autoencoder_forward.7} parent=0 // pred_check
    _
  $region15: #{autoencoder_forward.7} parent=0 // pred_check_branch
    %199 = sbr.rel (0) target = $region17
  $region16: #{autoencoder_forward.7} parent=0 // pred_region
    _
  $region17: #{autoencoder_forward.7} parent=0 // pred_fallthru
    _
  // Predicated region
  $region18: #{autoencoder_forward.7} parent=0 // pred_check
    _
  $region19: #{autoencoder_forward.7} parent=0 // pred_check_branch
    %201 = sbr.rel (0) target = $region21
  $region20: #{autoencoder_forward.7} parent=0 // pred_region
    _
  $region21: #{autoencoder_forward.7} parent=0 // pred_fallthru
    _

// kernel: tile.0
$region0: #{tile.0}
  %s0 = inlined_call_operand.vmem [shape: f32[4,1,1,32], index: 0, kind: input, shape index: {}]
  %s1 = inlined_call_operand.vmem [shape: f32[128,1], index: 1, kind: output, shape index: {}]
  $region1: #{tile.0} parent=0
    #allocation0 [shape = 'u8[4096]{0}', space=vmem, size = 0x1000, scoped, tag = 'scoped mem for input reshape']
    %s3 = sshll.u32 1, 4
    %s4 = ssub.s32 %s3, 1
    %v5 = vld [vmem:[%s0] sm:%s4]
    %6 = vst [vmem:[#allocation0] sm:%s4] %v5
    %v7 = vld [vmem:[#allocation0] sm:$0xf]
    %vm8 = vcmask 7168
    %9 = vst.msk [vmem:[%s1] sm:$0x1] %vm8, %v7
    %s10 = scalar_lea.vmem %s1, 31
    %11 = vst.msk [vmem:[%s10] sm:$0x2] %vm8, %v7
    %s12 = scalar_lea.vmem %s1, 62
    %13 = vst.msk [vmem:[%s12] sm:$0x4] %vm8, %v7
    %s14 = scalar_lea.vmem %s1, 93
    %15 = vst.msk [vmem:[%s14] sm:$0x8] %vm8, %v7
    %v16 = vld [vmem:[#allocation0] sm:$0xf]
    %17 = vrot.lane.b32.xlu0 %v16, 127
    %v18 = vpop.permute.xlu0 %17
    %vm19 = vcmask 7168
    %s20 = scalar_lea.vmem %s1, 1
    %21 = vst.msk [vmem:[%s20] sm:$0x1] %vm19, %v18
    %s22 = scalar_lea.vmem %s1, 32
    %23 = vst.msk [vmem:[%s22] sm:$0x2] %vm19, %v18
    %s24 = scalar_lea.vmem %s1, 63
    %25 = vst.msk [vmem:[%s24] sm:$0x4] %vm19, %v18
    %s26 = scalar_lea.vmem %s1, 94
    %27 = vst.msk [vmem:[%s26] sm:$0x8] %vm19, %v18
    %v28 = vld [vmem:[#allocation0] sm:$0xf]
    %29 = vrot.lane.b32.xlu0 %v28, 126
    %v30 = vpop.permute.xlu0 %29
    %vm31 = vcmask 7168
    %s32 = scalar_lea.vmem %s1, 2
    %33 = vst.msk [vmem:[%s32] sm:$0x1] %vm31, %v30
    %s34 = scalar_lea.vmem %s1, 33
    %35 = vst.msk [vmem:[%s34] sm:$0x2] %vm31, %v30
    %s36 = scalar_lea.vmem %s1, 64
    %37 = vst.msk [vmem:[%s36] sm:$0x4] %vm31, %v30
    %s38 = scalar_lea.vmem %s1, 95
    %39 = vst.msk [vmem:[%s38] sm:$0x8] %vm31, %v30
    %v40 = vld [vmem:[#allocation0] sm:$0xf]
    %41 = vrot.lane.b32.xlu0 %v40, 125
    %v42 = vpop.permute.xlu0 %41
    %vm43 = vcmask 7168
    %s44 = scalar_lea.vmem %s1, 3
    %45 = vst.msk [vmem:[%s44] sm:$0x1] %vm43, %v42
    %s46 = scalar_lea.vmem %s1, 34
    %47 = vst.msk [vmem:[%s46] sm:$0x2] %vm43, %v42
    %s48 = scalar_lea.vmem %s1, 65
    %49 = vst.msk [vmem:[%s48] sm:$0x4] %vm43, %v42
    %s50 = scalar_lea.vmem %s1, 96
    %51 = vst.msk [vmem:[%s50] sm:$0x8] %vm43, %v42
    %v52 = vld [vmem:[#allocation0] sm:$0xf]
    %53 = vrot.lane.b32.xlu0 %v52, 124
    %v54 = vpop.permute.xlu0 %53
    %vm55 = vcmask 7168
    %s56 = scalar_lea.vmem %s1, 4
    %57 = vst.msk [vmem:[%s56] sm:$0x1] %vm55, %v54
    %s58 = scalar_lea.vmem %s1, 35
    %59 = vst.msk [vmem:[%s58] sm:$0x2] %vm55, %v54
    %s60 = scalar_lea.vmem %s1, 66
    %61 = vst.msk [vmem:[%s60] sm:$0x4] %vm55, %v54
    %s62 = scalar_lea.vmem %s1, 97
    %63 = vst.msk [vmem:[%s62] sm:$0x8] %vm55, %v54
    %v64 = vld [vmem:[#allocation0] sm:$0xf]
    %65 = vrot.lane.b32.xlu0 %v64, 123
    %v66 = vpop.permute.xlu0 %65
    %vm67 = vcmask 7168
    %s68 = scalar_lea.vmem %s1, 5
    %69 = vst.msk [vmem:[%s68] sm:$0x1] %vm67, %v66
    %s70 = scalar_lea.vmem %s1, 36
    %71 = vst.msk [vmem:[%s70] sm:$0x2] %vm67, %v66
    %s72 = scalar_lea.vmem %s1, 67
    %73 = vst.msk [vmem:[%s72] sm:$0x4] %vm67, %v66
    %s74 = scalar_lea.vmem %s1, 98
    %75 = vst.msk [vmem:[%s74] sm:$0x8] %vm67, %v66
    %v76 = vld [vmem:[#allocation0] sm:$0xf]
    %77 = vrot.lane.b32.xlu0 %v76, 122
    %v78 = vpop.permute.xlu0 %77
    %vm79 = vcmask 7168
    %s80 = scalar_lea.vmem %s1, 6
    %81 = vst.msk [vmem:[%s80] sm:$0x1] %vm79, %v78
    %s82 = scalar_lea.vmem %s1, 37
    %83 = vst.msk [vmem:[%s82] sm:$0x2] %vm79, %v78
    %s84 = scalar_lea.vmem %s1, 68
    %85 = vst.msk [vmem:[%s84] sm:$0x4] %vm79, %v78
    %s86 = scalar_lea.vmem %s1, 99
    %87 = vst.msk [vmem:[%s86] sm:$0x8] %vm79, %v78
    %v88 = vld [vmem:[#allocation0] sm:$0xf]
    %89 = vrot.lane.b32.xlu0 %v88, 121
    %v90 = vpop.permute.xlu0 %89
    %vm91 = vcmask 7168
    %s92 = scalar_lea.vmem %s1, 7
    %93 = vst.msk [vmem:[%s92] sm:$0x1] %vm91, %v90
    %s94 = scalar_lea.vmem %s1, 38
    %95 = vst.msk [vmem:[%s94] sm:$0x2] %vm91, %v90
    %s96 = scalar_lea.vmem %s1, 69
    %97 = vst.msk [vmem:[%s96] sm:$0x4] %vm91, %v90
    %s98 = scalar_lea.vmem %s1, 100
    %99 = vst.msk [vmem:[%s98] sm:$0x8] %vm91, %v90
    %v100 = vld [vmem:[#allocation0] sm:$0xf]
    %101 = vrot.lane.b32.xlu0 %v100, 120
    %v102 = vpop.permute.xlu0 %101
    %vm103 = vcmask 7168
    %s104 = scalar_lea.vmem %s1, 8
    %105 = vst.msk [vmem:[%s104] sm:$0x1] %vm103, %v102
    %s106 = scalar_lea.vmem %s1, 39
    %107 = vst.msk [vmem:[%s106] sm:$0x2] %vm103, %v102
    %s108 = scalar_lea.vmem %s1, 70
    %109 = vst.msk [vmem:[%s108] sm:$0x4] %vm103, %v102
    %s110 = scalar_lea.vmem %s1, 101
    %111 = vst.msk [vmem:[%s110] sm:$0x8] %vm103, %v102
    %v112 = vld [vmem:[#allocation0] sm:$0xf]
    %113 = vrot.lane.b32.xlu0 %v112, 119
    %v114 = vpop.permute.xlu0 %113
    %vm115 = vcmask 7168
    %s116 = scalar_lea.vmem %s1, 9
    %117 = vst.msk [vmem:[%s116] sm:$0x1] %vm115, %v114
    %s118 = scalar_lea.vmem %s1, 40
    %119 = vst.msk [vmem:[%s118] sm:$0x2] %vm115, %v114
    %s120 = scalar_lea.vmem %s1, 71
    %121 = vst.msk [vmem:[%s120] sm:$0x4] %vm115, %v114
    %s122 = scalar_lea.vmem %s1, 102
    %123 = vst.msk [vmem:[%s122] sm:$0x8] %vm115, %v114
    %v124 = vld [vmem:[#allocation0] sm:$0xf]
    %125 = vrot.lane.b32.xlu0 %v124, 118
    %v126 = vpop.permute.xlu0 %125
    %vm127 = vcmask 7168
    %s128 = scalar_lea.vmem %s1, 10
    %129 = vst.msk [vmem:[%s128] sm:$0x1] %vm127, %v126
    %s130 = scalar_lea.vmem %s1, 41
    %131 = vst.msk [vmem:[%s130] sm:$0x2] %vm127, %v126
    %s132 = scalar_lea.vmem %s1, 72
    %133 = vst.msk [vmem:[%s132] sm:$0x4] %vm127, %v126
    %s134 = scalar_lea.vmem %s1, 103
    %135 = vst.msk [vmem:[%s134] sm:$0x8] %vm127, %v126
    %v136 = vld [vmem:[#allocation0] sm:$0xf]
    %137 = vrot.lane.b32.xlu0 %v136, 117
    %v138 = vpop.permute.xlu0 %137
    %vm139 = vcmask 7168
    %s140 = scalar_lea.vmem %s1, 11
    %141 = vst.msk [vmem:[%s140] sm:$0x1] %vm139, %v138
    %s142 = scalar_lea.vmem %s1, 42
    %143 = vst.msk [vmem:[%s142] sm:$0x2] %vm139, %v138
    %s144 = scalar_lea.vmem %s1, 73
    %145 = vst.msk [vmem:[%s144] sm:$0x4] %vm139, %v138
    %s146 = scalar_lea.vmem %s1, 104
    %147 = vst.msk [vmem:[%s146] sm:$0x8] %vm139, %v138
    %v148 = vld [vmem:[#allocation0] sm:$0xf]
    %149 = vrot.lane.b32.xlu0 %v148, 116
    %v150 = vpop.permute.xlu0 %149
    %vm151 = vcmask 7168
    %s152 = scalar_lea.vmem %s1, 12
    %153 = vst.msk [vmem:[%s152] sm:$0x1] %vm151, %v150
    %s154 = scalar_lea.vmem %s1, 43
    %155 = vst.msk [vmem:[%s154] sm:$0x2] %vm151, %v150
    %s156 = scalar_lea.vmem %s1, 74
    %157 = vst.msk [vmem:[%s156] sm:$0x4] %vm151, %v150
    %s158 = scalar_lea.vmem %s1, 105
    %159 = vst.msk [vmem:[%s158] sm:$0x8] %vm151, %v150
    %v160 = vld [vmem:[#allocation0] sm:$0xf]
    %161 = vrot.lane.b32.xlu0 %v160, 115
    %v162 = vpop.permute.xlu0 %161
    %vm163 = vcmask 7168
    %s164 = scalar_lea.vmem %s1, 13
    %165 = vst.msk [vmem:[%s164] sm:$0x1] %vm163, %v162
    %s166 = scalar_lea.vmem %s1, 44
    %167 = vst.msk [vmem:[%s166] sm:$0x2] %vm163, %v162
    %s168 = scalar_lea.vmem %s1, 75
    %169 = vst.msk [vmem:[%s168] sm:$0x4] %vm163, %v162
    %s170 = scalar_lea.vmem %s1, 106
    %171 = vst.msk [vmem:[%s170] sm:$0x8] %vm163, %v162
    %v172 = vld [vmem:[#allocation0] sm:$0xf]
    %173 = vrot.lane.b32.xlu0 %v172, 114
    %v174 = vpop.permute.xlu0 %173
    %vm175 = vcmask 7168
    %s176 = scalar_lea.vmem %s1, 14
    %177 = vst.msk [vmem:[%s176] sm:$0x1] %vm175, %v174
    %s178 = scalar_lea.vmem %s1, 45
    %179 = vst.msk [vmem:[%s178] sm:$0x2] %vm175, %v174
    %s180 = scalar_lea.vmem %s1, 76
    %181 = vst.msk [vmem:[%s180] sm:$0x4] %vm175, %v174
    %s182 = scalar_lea.vmem %s1, 107
    %183 = vst.msk [vmem:[%s182] sm:$0x8] %vm175, %v174
    %v184 = vld [vmem:[#allocation0] sm:$0xf]
    %185 = vrot.lane.b32.xlu0 %v184, 113
    %v186 = vpop.permute.xlu0 %185
    %vm187 = vcmask 7168
    %s188 = scalar_lea.vmem %s1, 15
    %189 = vst.msk [vmem:[%s188] sm:$0x1] %vm187, %v186
    %s190 = scalar_lea.vmem %s1, 46
    %191 = vst.msk [vmem:[%s190] sm:$0x2] %vm187, %v186
    %s192 = scalar_lea.vmem %s1, 77
    %193 = vst.msk [vmem:[%s192] sm:$0x4] %vm187, %v186
    %s194 = scalar_lea.vmem %s1, 108
    %195 = vst.msk [vmem:[%s194] sm:$0x8] %vm187, %v186
    %v196 = vld [vmem:[#allocation0] sm:$0xf]
    %197 = vrot.lane.b32.xlu0 %v196, 112
    %v198 = vpop.permute.xlu0 %197
    %vm199 = vcmask 7168
    %s200 = scalar_lea.vmem %s1, 16
    %201 = vst.msk [vmem:[%s200] sm:$0x1] %vm199, %v198
    %s202 = scalar_lea.vmem %s1, 47
    %203 = vst.msk [vmem:[%s202] sm:$0x2] %vm199, %v198
    %s204 = scalar_lea.vmem %s1, 78
    %205 = vst.msk [vmem:[%s204] sm:$0x4] %vm199, %v198
    %s206 = scalar_lea.vmem %s1, 109
    %207 = vst.msk [vmem:[%s206] sm:$0x8] %vm199, %v198
    %v208 = vld [vmem:[#allocation0] sm:$0xf]
    %209 = vrot.lane.b32.xlu0 %v208, 111
    %v210 = vpop.permute.xlu0 %209
    %vm211 = vcmask 7168
    %s212 = scalar_lea.vmem %s1, 17
    %213 = vst.msk [vmem:[%s212] sm:$0x1] %vm211, %v210
    %s214 = scalar_lea.vmem %s1, 48
    %215 = vst.msk [vmem:[%s214] sm:$0x2] %vm211, %v210
    %s216 = scalar_lea.vmem %s1, 79
    %217 = vst.msk [vmem:[%s216] sm:$0x4] %vm211, %v210
    %s218 = scalar_lea.vmem %s1, 110
    %219 = vst.msk [vmem:[%s218] sm:$0x8] %vm211, %v210
    %v220 = vld [vmem:[#allocation0] sm:$0xf]
    %221 = vrot.lane.b32.xlu0 %v220, 110
    %v222 = vpop.permute.xlu0 %221
    %vm223 = vcmask 7168
    %s224 = scalar_lea.vmem %s1, 18
    %225 = vst.msk [vmem:[%s224] sm:$0x1] %vm223, %v222
    %s226 = scalar_lea.vmem %s1, 49
    %227 = vst.msk [vmem:[%s226] sm:$0x2] %vm223, %v222
    %s228 = scalar_lea.vmem %s1, 80
    %229 = vst.msk [vmem:[%s228] sm:$0x4] %vm223, %v222
    %s230 = scalar_lea.vmem %s1, 111
    %231 = vst.msk [vmem:[%s230] sm:$0x8] %vm223, %v222
    %v232 = vld [vmem:[#allocation0] sm:$0xf]
    %233 = vrot.lane.b32.xlu0 %v232, 109
    %v234 = vpop.permute.xlu0 %233
    %vm235 = vcmask 7168
    %s236 = scalar_lea.vmem %s1, 19
    %237 = vst.msk [vmem:[%s236] sm:$0x1] %vm235, %v234
    %s238 = scalar_lea.vmem %s1, 50
    %239 = vst.msk [vmem:[%s238] sm:$0x2] %vm235, %v234
    %s240 = scalar_lea.vmem %s1, 81
    %241 = vst.msk [vmem:[%s240] sm:$0x4] %vm235, %v234
    %s242 = scalar_lea.vmem %s1, 112
    %243 = vst.msk [vmem:[%s242] sm:$0x8] %vm235, %v234
    %v244 = vld [vmem:[#allocation0] sm:$0xf]
    %245 = vrot.lane.b32.xlu0 %v244, 108
    %v246 = vpop.permute.xlu0 %245
    %vm247 = vcmask 7168
    %s248 = scalar_lea.vmem %s1, 20
    %249 = vst.msk [vmem:[%s248] sm:$0x1] %vm247, %v246
    %s250 = scalar_lea.vmem %s1, 51
    %251 = vst.msk [vmem:[%s250] sm:$0x2] %vm247, %v246
    %s252 = scalar_lea.vmem %s1, 82
    %253 = vst.msk [vmem:[%s252] sm:$0x4] %vm247, %v246
    %s254 = scalar_lea.vmem %s1, 113
    %255 = vst.msk [vmem:[%s254] sm:$0x8] %vm247, %v246
    %v256 = vld [vmem:[#allocation0] sm:$0xf]
    %257 = vrot.lane.b32.xlu0 %v256, 107
    %v258 = vpop.permute.xlu0 %257
    %vm259 = vcmask 7168
    %s260 = scalar_lea.vmem %s1, 21
    %261 = vst.msk [vmem:[%s260] sm:$0x1] %vm259, %v258
    %s262 = scalar_lea.vmem %s1, 52
    %263 = vst.msk [vmem:[%s262] sm:$0x2] %vm259, %v258
    %s264 = scalar_lea.vmem %s1, 83
    %265 = vst.msk [vmem:[%s264] sm:$0x4] %vm259, %v258
    %s266 = scalar_lea.vmem %s1, 114
    %267 = vst.msk [vmem:[%s266] sm:$0x8] %vm259, %v258
    %v268 = vld [vmem:[#allocation0] sm:$0xf]
    %269 = vrot.lane.b32.xlu0 %v268, 106
    %v270 = vpop.permute.xlu0 %269
    %vm271 = vcmask 7168
    %s272 = scalar_lea.vmem %s1, 22
    %273 = vst.msk [vmem:[%s272] sm:$0x1] %vm271, %v270
    %s274 = scalar_lea.vmem %s1, 53
    %275 = vst.msk [vmem:[%s274] sm:$0x2] %vm271, %v270
    %s276 = scalar_lea.vmem %s1, 84
    %277 = vst.msk [vmem:[%s276] sm:$0x4] %vm271, %v270
    %s278 = scalar_lea.vmem %s1, 115
    %279 = vst.msk [vmem:[%s278] sm:$0x8] %vm271, %v270
    %v280 = vld [vmem:[#allocation0] sm:$0xf]
    %281 = vrot.lane.b32.xlu0 %v280, 105
    %v282 = vpop.permute.xlu0 %281
    %vm283 = vcmask 7168
    %s284 = scalar_lea.vmem %s1, 23
    %285 = vst.msk [vmem:[%s284] sm:$0x1] %vm283, %v282
    %s286 = scalar_lea.vmem %s1, 54
    %287 = vst.msk [vmem:[%s286] sm:$0x2] %vm283, %v282
    %s288 = scalar_lea.vmem %s1, 85
    %289 = vst.msk [vmem:[%s288] sm:$0x4] %vm283, %v282
    %s290 = scalar_lea.vmem %s1, 116
    %291 = vst.msk [vmem:[%s290] sm:$0x8] %vm283, %v282
    %v292 = vld [vmem:[#allocation0] sm:$0xf]
    %293 = vrot.lane.b32.xlu0 %v292, 104
    %v294 = vpop.permute.xlu0 %293
    %vm295 = vcmask 7168
    %s296 = scalar_lea.vmem %s1, 24
    %297 = vst.msk [vmem:[%s296] sm:$0x1] %vm295, %v294
    %s298 = scalar_lea.vmem %s1, 55
    %299 = vst.msk [vmem:[%s298] sm:$0x2] %vm295, %v294
    %s300 = scalar_lea.vmem %s1, 86
    %301 = vst.msk [vmem:[%s300] sm:$0x4] %vm295, %v294
    %s302 = scalar_lea.vmem %s1, 117
    %303 = vst.msk [vmem:[%s302] sm:$0x8] %vm295, %v294
    %v304 = vld [vmem:[#allocation0] sm:$0xf]
    %305 = vrot.lane.b32.xlu0 %v304, 103
    %v306 = vpop.permute.xlu0 %305
    %vm307 = vcmask 7168
    %s308 = scalar_lea.vmem %s1, 25
    %309 = vst.msk [vmem:[%s308] sm:$0x1] %vm307, %v306
    %s310 = scalar_lea.vmem %s1, 56
    %311 = vst.msk [vmem:[%s310] sm:$0x2] %vm307, %v306
    %s312 = scalar_lea.vmem %s1, 87
    %313 = vst.msk [vmem:[%s312] sm:$0x4] %vm307, %v306
    %s314 = scalar_lea.vmem %s1, 118
    %315 = vst.msk [vmem:[%s314] sm:$0x8] %vm307, %v306
    %v316 = vld [vmem:[#allocation0] sm:$0xf]
    %317 = vrot.lane.b32.xlu0 %v316, 102
    %v318 = vpop.permute.xlu0 %317
    %vm319 = vcmask 7168
    %s320 = scalar_lea.vmem %s1, 26
    %321 = vst.msk [vmem:[%s320] sm:$0x1] %vm319, %v318
    %s322 = scalar_lea.vmem %s1, 57
    %323 = vst.msk [vmem:[%s322] sm:$0x2] %vm319, %v318
    %s324 = scalar_lea.vmem %s1, 88
    %325 = vst.msk [vmem:[%s324] sm:$0x4] %vm319, %v318
    %s326 = scalar_lea.vmem %s1, 119
    %327 = vst.msk [vmem:[%s326] sm:$0x8] %vm319, %v318
    %v328 = vld [vmem:[#allocation0] sm:$0xf]
    %329 = vrot.lane.b32.xlu0 %v328, 101
    %v330 = vpop.permute.xlu0 %329
    %vm331 = vcmask 7168
    %s332 = scalar_lea.vmem %s1, 27
    %333 = vst.msk [vmem:[%s332] sm:$0x1] %vm331, %v330
    %s334 = scalar_lea.vmem %s1, 58
    %335 = vst.msk [vmem:[%s334] sm:$0x2] %vm331, %v330
    %s336 = scalar_lea.vmem %s1, 89
    %337 = vst.msk [vmem:[%s336] sm:$0x4] %vm331, %v330
    %s338 = scalar_lea.vmem %s1, 120
    %339 = vst.msk [vmem:[%s338] sm:$0x8] %vm331, %v330
    %v340 = vld [vmem:[#allocation0] sm:$0xf]
    %341 = vrot.lane.b32.xlu0 %v340, 100
    %v342 = vpop.permute.xlu0 %341
    %vm343 = vcmask 7168
    %s344 = scalar_lea.vmem %s1, 28
    %345 = vst.msk [vmem:[%s344] sm:$0x1] %vm343, %v342
    %s346 = scalar_lea.vmem %s1, 59
    %347 = vst.msk [vmem:[%s346] sm:$0x2] %vm343, %v342
    %s348 = scalar_lea.vmem %s1, 90
    %349 = vst.msk [vmem:[%s348] sm:$0x4] %vm343, %v342
    %s350 = scalar_lea.vmem %s1, 121
    %351 = vst.msk [vmem:[%s350] sm:$0x8] %vm343, %v342
    %v352 = vld [vmem:[#allocation0] sm:$0xf]
    %353 = vrot.lane.b32.xlu0 %v352, 99
    %v354 = vpop.permute.xlu0 %353
    %vm355 = vcmask 7168
    %s356 = scalar_lea.vmem %s1, 29
    %357 = vst.msk [vmem:[%s356] sm:$0x1] %vm355, %v354
    %s358 = scalar_lea.vmem %s1, 60
    %359 = vst.msk [vmem:[%s358] sm:$0x2] %vm355, %v354
    %s360 = scalar_lea.vmem %s1, 91
    %361 = vst.msk [vmem:[%s360] sm:$0x4] %vm355, %v354
    %s362 = scalar_lea.vmem %s1, 122
    %363 = vst.msk [vmem:[%s362] sm:$0x8] %vm355, %v354
    %v364 = vld [vmem:[#allocation0] sm:$0xf]
    %365 = vrot.lane.b32.xlu0 %v364, 98
    %v366 = vpop.permute.xlu0 %365
    %vm367 = vcmask 7168
    %s368 = scalar_lea.vmem %s1, 30
    %369 = vst.msk [vmem:[%s368] sm:$0x1] %vm367, %v366
    %s370 = scalar_lea.vmem %s1, 61
    %371 = vst.msk [vmem:[%s370] sm:$0x2] %vm367, %v366
    %s372 = scalar_lea.vmem %s1, 92
    %373 = vst.msk [vmem:[%s372] sm:$0x4] %vm367, %v366
    %s374 = scalar_lea.vmem %s1, 123
    %375 = vst.msk [vmem:[%s374] sm:$0x8] %vm367, %v366
    %v376 = vld [vmem:[#allocation0] sm:$0xf]
    %377 = vrot.lane.b32.xlu0 %v376, 97
    %v378 = vpop.permute.xlu0 %377
    %vm379 = vcmask 7168
    %s380 = scalar_lea.vmem %s1, 31
    %381 = vst.msk [vmem:[%s380] sm:$0x1] %vm379, %v378
    %s382 = scalar_lea.vmem %s1, 62
    %383 = vst.msk [vmem:[%s382] sm:$0x2] %vm379, %v378
    %s384 = scalar_lea.vmem %s1, 93
    %385 = vst.msk [vmem:[%s384] sm:$0x4] %vm379, %v378
    %s386 = scalar_lea.vmem %s1, 124
    %387 = vst.msk [vmem:[%s386] sm:$0x8] %vm379, %v378

// kernel: autoencoder_forward.8
$region0: #{autoencoder_forward.8}
  #allocation0 [shape = 'u32[]', space=smem, size = 0x4, offset = 0x4, fixed_abs, tag = 'smem constant byte address 0x4 - core index']
  #allocation1 [shape = 'u32[144,128]{1,0:T(1,128)}', space=vmem, size = 0x12000, scoped, tag = 'internal scratch']
  %s0 = inlined_call_operand.vmem [shape: bf16[64,288], index: 0, kind: input, shape index: {}]
  %s1 = inlined_call_operand.vmem [shape: bf16[288,8], index: 1, kind: input, shape index: {}]
  %s2 = inlined_call_operand.vmem [shape: f32[64,1], index: 2, kind: input, shape index: {}]
  %s3 = inlined_call_operand.vmem [shape: f32[64,8], index: 3, kind: output, shape index: {}]
  %s4 = sld [smem:[#allocation0]]
  $region22: #{autoencoder_forward.8} parent=0
    _
  %s6 = ssub.s32 1, %s4
  %s7 = scalar_select 0, %s6, %s4
  // Predicated region
  $region2: #{autoencoder_forward.8} parent=0 // pred_check
    _
  $region3: #{autoencoder_forward.8} parent=0 // pred_check_branch
    %9 = sbr.rel (0) target = $region5
  $region4: #{autoencoder_forward.8} parent=0 // pred_region
    _
  $region5: #{autoencoder_forward.8} parent=0 // pred_fallthru
    _
  // Predicated region
  $region6: #{autoencoder_forward.8} parent=0 // pred_check
    _
  $region7: #{autoencoder_forward.8} parent=0 // pred_check_branch
    %11 = sbr.rel (0) target = $region9
  $region8: #{autoencoder_forward.8} parent=0 // pred_region
    _
  $region9: #{autoencoder_forward.8} parent=0 // pred_fallthru
    _
  // Predicated region
  $region10: #{autoencoder_forward.8} parent=0 // pred_check
    _
  $region11: #{autoencoder_forward.8} parent=0 // pred_check_branch
    %13 = sbr.rel (0) target = $region13
  $region12: #{autoencoder_forward.8} parent=0 // pred_region
    _
  $region13: #{autoencoder_forward.8} parent=0 // pred_fallthru
    _
  %v15 = vld [vmem:[%s0] sm:$0xff]
  %v16 = vld [vmem:[%s0 + $0x8] sm:$0xf]
  %v17 = vld [vmem:[%s0 + $0xc] sm:$0xff]
  %v18 = vld [vmem:[%s0 + $0x14] sm:$0xf]
  %v19 = vld [vmem:[%s0 + $0x18] sm:$0xff]
  %v20 = vld [vmem:[%s0 + $0x20] sm:$0xf]
  %v21 = vld [vmem:[%s0 + $0x24] sm:$0xff]
  %v22 = vld [vmem:[%s0 + $0x2c] sm:$0xf]
  %v23 = vld [vmem:[%s0 + $0x30] sm:$0xff]
  %v24 = vld [vmem:[%s0 + $0x38] sm:$0xf]
  %v25 = vld [vmem:[%s0 + $0x3c] sm:$0xff]
  %v26 = vld [vmem:[%s0 + $0x44] sm:$0xf]
  %v27 = vld [vmem:[%s0 + $0x48] sm:$0xff]
  %v28 = vld [vmem:[%s0 + $0x50] sm:$0xf]
  %v29 = vld [vmem:[%s0 + $0x54] sm:$0xff]
  %v30 = vld [vmem:[%s0 + $0x5c] sm:$0xf]
  %v31 = vld [vmem:[%s1] sm:$0xf]
  %v32 = vld [vmem:[%s1 + $0x4] sm:$0xf]
  %v33 = vld [vmem:[%s1 + $0x8] sm:$0xf]
  %v34 = vld [vmem:[%s1 + $0xc] sm:$0xf]
  %v35 = vld [vmem:[%s1 + $0x10] sm:$0xf]
  %v36 = vld [vmem:[%s1 + $0x14] sm:$0xf]
  %v37 = vld [vmem:[%s1 + $0x18] sm:$0xf]
  %v38 = vld [vmem:[%s1 + $0x1c] sm:$0xf]
  %v39 = vld [vmem:[%s1 + $0x20] sm:$0xf]
  %v40 = vld [vmem:[%s1 + $0x24] sm:$0xf]
  %v41 = vld [vmem:[%s1 + $0x28] sm:$0xf]
  %v42 = vld [vmem:[%s1 + $0x2c] sm:$0xf]
  %v43 = vld [vmem:[%s1 + $0x30] sm:$0xf]
  %v44 = vld [vmem:[%s1 + $0x34] sm:$0xf]
  %v45 = vld [vmem:[%s1 + $0x38] sm:$0xf]
  %v46 = vld [vmem:[%s1 + $0x3c] sm:$0xf]
  %v47 = vld [vmem:[%s1 + $0x40] sm:$0xf]
  %v48 = vld [vmem:[%s1 + $0x44] sm:$0xf]
  %v49 = vld [vmem:[%s1 + $0x48] sm:$0xf]
  %v50 = vld [vmem:[%s1 + $0x4c] sm:$0xf]
  %v51 = vld [vmem:[%s1 + $0x50] sm:$0xf]
  %v52 = vld [vmem:[%s1 + $0x54] sm:$0xf]
  %v53 = vld [vmem:[%s1 + $0x58] sm:$0xf]
  %v54 = vld [vmem:[%s1 + $0x5c] sm:$0xf]
  %v55 = vld [vmem:[%s1 + $0x60] sm:$0xf]
  %v56 = vld [vmem:[%s1 + $0x64] sm:$0xf]
  %v57 = vld [vmem:[%s1 + $0x68] sm:$0xf]
  %v58 = vld [vmem:[%s1 + $0x6c] sm:$0xf]
  %v59 = vld [vmem:[%s1 + $0x70] sm:$0xf]
  %v60 = vld [vmem:[%s1 + $0x74] sm:$0xf]
  %v61 = vld [vmem:[%s1 + $0x78] sm:$0xf]
  %v62 = vld [vmem:[%s1 + $0x7c] sm:$0xf]
  %v63 = vld [vmem:[%s1 + $0x80] sm:$0xf]
  %v64 = vld [vmem:[%s1 + $0x84] sm:$0xf]
  %v65 = vld [vmem:[%s1 + $0x88] sm:$0xf]
  %v66 = vld [vmem:[%s1 + $0x8c] sm:$0xf]
  %v67 = vld [vmem:[%s2] sm:$0xff]
  %v68 = vld [vmem:[%s2 + $0x8] sm:$0xff]
  %v69 = vld [vmem:[%s2 + $0x10] sm:$0xff]
  %v70 = vld [vmem:[%s2 + $0x18] sm:$0xff]
  %v71 = vld [vmem:[%s2 + $0x20] sm:$0xff]
  %v72 = vld [vmem:[%s2 + $0x28] sm:$0xff]
  %v73 = vld [vmem:[%s2 + $0x30] sm:$0xff]
  %v74 = vld [vmem:[%s2 + $0x38] sm:$0xff]
  %76 = vset.pattern.permute.xlu0 0
  %77 = vperm.xlu0 %76, %v67
  %v78 = vpop.permute.xlu0 %77
  %81 = vset.pattern.permute.xlu0 0
  %82 = vperm.xlu0 %81, %v68
  %v83 = vpop.permute.xlu0 %82
  %86 = vset.pattern.permute.xlu0 0
  %87 = vperm.xlu0 %86, %v69
  %v88 = vpop.permute.xlu0 %87
  %91 = vset.pattern.permute.xlu0 0
  %92 = vperm.xlu0 %91, %v70
  %v93 = vpop.permute.xlu0 %92
  %96 = vset.pattern.permute.xlu0 0
  %97 = vperm.xlu0 %96, %v71
  %v98 = vpop.permute.xlu0 %97
  %101 = vset.pattern.permute.xlu0 0
  %102 = vperm.xlu0 %101, %v72
  %v103 = vpop.permute.xlu0 %102
  %106 = vset.pattern.permute.xlu0 0
  %107 = vperm.xlu0 %106, %v73
  %v108 = vpop.permute.xlu0 %107
  %111 = vset.pattern.permute.xlu0 0
  %112 = vperm.xlu0 %111, %v74
  %v113 = vpop.permute.xlu0 %112
  %v131 = vunpack.c.l.b16 %v15
  %v132 = vunpack.c.h.b16 %v15
  %v133 = vunpack.c.l.b16 %v16
  %v134 = vunpack.c.l.b16 %v17
  %v135 = vunpack.c.h.b16 %v17
  %v136 = vunpack.c.l.b16 %v18
  %v137 = vunpack.c.l.b16 %v19
  %v138 = vunpack.c.h.b16 %v19
  %v139 = vunpack.c.l.b16 %v20
  %v140 = vunpack.c.l.b16 %v21
  %v141 = vunpack.c.h.b16 %v21
  %v142 = vunpack.c.l.b16 %v22
  %v143 = vunpack.c.l.b16 %v23
  %v144 = vunpack.c.h.b16 %v23
  %v145 = vunpack.c.l.b16 %v24
  %v146 = vunpack.c.l.b16 %v25
  %v147 = vunpack.c.h.b16 %v25
  %v148 = vunpack.c.l.b16 %v26
  %v149 = vunpack.c.l.b16 %v27
  %v150 = vunpack.c.h.b16 %v27
  %v151 = vunpack.c.l.b16 %v28
  %v152 = vunpack.c.l.b16 %v29
  %v153 = vunpack.c.h.b16 %v29
  %v154 = vunpack.c.l.b16 %v30
  %v155 = vpack.c.b16 %v134, %v131
  %v156 = vpack.c.b16 %v135, %v132
  %v157 = vpack.c.b16 %v136, %v133
  %v158 = vpack.c.b16 %v140, %v137
  %v159 = vpack.c.b16 %v141, %v138
  %v160 = vpack.c.b16 %v142, %v139
  %v161 = vpack.c.b16 %v146, %v143
  %v162 = vpack.c.b16 %v147, %v144
  %v163 = vpack.c.b16 %v148, %v145
  %v164 = vpack.c.b16 %v152, %v149
  %v165 = vpack.c.b16 %v153, %v150
  %v166 = vpack.c.b16 %v154, %v151
  %v211 = vunpack.c.l.b16 %v31
  %v212 = vunpack.c.l.b16 %v32
  %v213 = vunpack.c.l.b16 %v33
  %v214 = vunpack.c.l.b16 %v34
  %v215 = vunpack.c.l.b16 %v35
  %v216 = vunpack.c.l.b16 %v36
  %v217 = vunpack.c.l.b16 %v37
  %v218 = vunpack.c.l.b16 %v38
  %v219 = vunpack.c.l.b16 %v39
  %v220 = vunpack.c.l.b16 %v40
  %v221 = vunpack.c.l.b16 %v41
  %v222 = vunpack.c.l.b16 %v42
  %v223 = vunpack.c.l.b16 %v43
  %v224 = vunpack.c.l.b16 %v44
  %v225 = vunpack.c.l.b16 %v45
  %v226 = vunpack.c.l.b16 %v46
  %v227 = vunpack.c.l.b16 %v47
  %v228 = vunpack.c.l.b16 %v48
  %v229 = vunpack.c.l.b16 %v49
  %v230 = vunpack.c.l.b16 %v50
  %v231 = vunpack.c.l.b16 %v51
  %v232 = vunpack.c.l.b16 %v52
  %v233 = vunpack.c.l.b16 %v53
  %v234 = vunpack.c.l.b16 %v54
  %v235 = vunpack.c.l.b16 %v55
  %v236 = vunpack.c.l.b16 %v56
  %v237 = vunpack.c.l.b16 %v57
  %v238 = vunpack.c.l.b16 %v58
  %v239 = vunpack.c.l.b16 %v59
  %v240 = vunpack.c.l.b16 %v60
  %v241 = vunpack.c.l.b16 %v61
  %v242 = vunpack.c.l.b16 %v62
  %v243 = vunpack.c.l.b16 %v63
  %v244 = vunpack.c.l.b16 %v64
  %v245 = vunpack.c.l.b16 %v65
  %v246 = vunpack.c.l.b16 %v66
  %v247 = vpack.c.b16 %v212, %v211
  %v248 = vpack.c.b16 %v214, %v213
  %v249 = vpack.c.b16 %v216, %v215
  %v250 = vpack.c.b16 %v218, %v217
  %v251 = vpack.c.b16 %v220, %v219
  %v252 = vpack.c.b16 %v222, %v221
  %v253 = vpack.c.b16 %v224, %v223
  %v254 = vpack.c.b16 %v226, %v225
  %v255 = vpack.c.b16 %v228, %v227
  %v256 = vpack.c.b16 %v230, %v229
  %v257 = vpack.c.b16 %v232, %v231
  %v258 = vpack.c.b16 %v234, %v233
  %v259 = vpack.c.b16 %v236, %v235
  %v260 = vpack.c.b16 %v238, %v237
  %v261 = vpack.c.b16 %v240, %v239
  %v262 = vpack.c.b16 %v242, %v241
  %v263 = vpack.c.b16 %v244, %v243
  %v264 = vpack.c.b16 %v246, %v245
  %vm283 = vcmask 261120
  %v285 = vsel %vm283, %v157, 0
  %v288 = vsel %vm283, %v160, 0
  %v291 = vsel %vm283, %v163, 0
  %v294 = vsel %vm283, %v166, 0
  %296 = vmatprep.subr.bf16.mxu0 0
  %297 = vmatpush1.bf16.msra.mxu0 %v254
  %298 = vmatprep.subr.bf16.mxu0 0
  %299 = vmatpush1.bf16.msra.mxu0 %v253
  %300 = vmatprep.subr.bf16.mxu0 0
  %301 = vmatpush1.bf16.msra.mxu0 %v252
  %302 = vmatprep.subr.bf16.mxu0 0
  %303 = vmatpush1.bf16.msra.mxu0 %v251
  %304 = vmatprep.subr.bf16.mxu0 0
  %305 = vmatpush1.bf16.msra.mxu0 %v250
  %306 = vmatprep.subr.bf16.mxu0 0
  %307 = vmatpush1.bf16.msra.mxu0 %v249
  %308 = vmatprep.subr.bf16.mxu0 0
  %309 = vmatpush1.bf16.msra.mxu0 %v248
  %310 = vmatprep.subr.bf16.mxu0 0
  %311 = vmatpush1.bf16.msra.mxu0 %v247
  %312 = vmatprep.subr.bf16.mxu0 0
  %313 = vmatpush2.bf16.msra.mxu0 %v262
  %314 = vmatprep.subr.bf16.mxu0 0
  %315 = vmatpush2.bf16.msra.mxu0 %v261
  %316 = vmatprep.subr.bf16.mxu0 0
  %317 = vmatpush2.bf16.msra.mxu0 %v260
  %318 = vmatprep.subr.bf16.mxu0 0
  %319 = vmatpush2.bf16.msra.mxu0 %v259
  %320 = vmatprep.subr.bf16.mxu0 0
  %321 = vmatpush2.bf16.msra.mxu0 %v258
  %322 = vmatprep.subr.bf16.mxu0 0
  %323 = vmatpush2.bf16.msra.mxu0 %v257
  %324 = vmatprep.subr.bf16.mxu0 0
  %325 = vmatpush2.bf16.msra.mxu0 %v256
  %326 = vmatprep.subr.bf16.mxu0 0
  %327 = vmatpush2.bf16.msra.mxu0 %v255
  %328 = vmatprep.mubr.bf16.mxu0 %v156
  %329 = vmatmul.mubr.bf16.gmra.mxu0 %v155
  %v330 = vpop.f32.mrf.mxu0
  %v331 = vadd.f32 %v78, %v330
  %v332 = vpop.f32.mrf.mxu0
  %v333 = vpop.f32.mrf.mxu0
  %v334 = vadd.f32 %v83, %v333
  %v335 = vpop.f32.mrf.mxu0
  %336 = vmatprep.mubr.bf16.mxu0 %v159
  %337 = vmatmul.mubr.bf16.gmra.mxu0 %v158
  %v338 = vpop.f32.mrf.mxu0
  %v339 = vadd.f32 %v88, %v338
  %v340 = vpop.f32.mrf.mxu0
  %v341 = vpop.f32.mrf.mxu0
  %v342 = vadd.f32 %v93, %v341
  %v343 = vpop.f32.mrf.mxu0
  %344 = vmatprep.mubr.bf16.mxu0 %v162
  %345 = vmatmul.mubr.bf16.gmra.mxu0 %v161
  %v346 = vpop.f32.mrf.mxu0
  %v347 = vadd.f32 %v98, %v346
  %v348 = vpop.f32.mrf.mxu0
  %v349 = vpop.f32.mrf.mxu0
  %v350 = vadd.f32 %v103, %v349
  %v351 = vpop.f32.mrf.mxu0
  %352 = vmatprep.mubr.bf16.mxu0 %v165
  %353 = vmatmul.mubr.bf16.gmra.mxu0 %v164
  %v354 = vpop.f32.mrf.mxu0
  %v355 = vadd.f32 %v108, %v354
  %v356 = vpop.f32.mrf.mxu0
  %v357 = vpop.f32.mrf.mxu0
  %v358 = vadd.f32 %v113, %v357
  %v359 = vpop.f32.mrf.mxu0
  %360 = vdwg.mxu0
  %361 = vmatprep.subr.bf16.mxu0 0
  %362 = vmatpush1.bf16.msra.mxu0 0
  %363 = vmatprep.subr.bf16.mxu0 0
  %364 = vmatpush1.bf16.msra.mxu0 0
  %365 = vmatprep.subr.bf16.mxu0 0
  %366 = vmatpush1.bf16.msra.mxu0 0
  %367 = vmatprep.subr.bf16.mxu0 0
  %368 = vmatpush1.bf16.msra.mxu0 0
  %369 = vmatprep.subr.bf16.mxu0 0
  %370 = vmatpush1.bf16.msra.mxu0 0
  %371 = vmatprep.subr.bf16.mxu0 0
  %372 = vmatpush1.bf16.msra.mxu0 0
  %373 = vmatprep.subr.bf16.mxu0 0
  %374 = vmatpush1.bf16.msra.mxu0 %v264
  %375 = vmatprep.subr.bf16.mxu0 0
  %376 = vmatpush1.bf16.msra.mxu0 %v263
  %377 = vmatprep.subr.bf16.mxu0 0
  %378 = vmatpush2.bf16.msra.mxu0 0
  %379 = vmatprep.subr.bf16.mxu0 0
  %380 = vmatpush2.bf16.msra.mxu0 0
  %381 = vmatprep.subr.bf16.mxu0 0
  %382 = vmatpush2.bf16.msra.mxu0 0
  %383 = vmatprep.subr.bf16.mxu0 0
  %384 = vmatpush2.bf16.msra.mxu0 0
  %385 = vmatprep.subr.bf16.mxu0 0
  %386 = vmatpush2.bf16.msra.mxu0 0
  %387 = vmatprep.subr.bf16.mxu0 0
  %388 = vmatpush2.bf16.msra.mxu0 0
  %389 = vmatprep.subr.bf16.mxu0 0
  %390 = vmatpush2.bf16.msra.mxu0 0
  %391 = vmatprep.subr.bf16.mxu0 0
  %392 = vmatpush2.bf16.msra.mxu0 0
  %393 = vmatprep.mubr.bf16.mxu0 0
  %394 = vmatmul.mubr.bf16.gmra.mxu0 %v285
  %v395 = vpop.f32.mrf.mxu0
  %v396 = vadd.f32 %v331, %v395
  %v397 = vpop.f32.mrf.mxu0
  %v398 = vpop.f32.mrf.mxu0
  %v399 = vadd.f32 %v334, %v398
  %v400 = vpop.f32.mrf.mxu0
  %401 = vmatprep.mubr.bf16.mxu0 0
  %402 = vmatmul.mubr.bf16.gmra.mxu0 %v288
  %v403 = vpop.f32.mrf.mxu0
  %v404 = vadd.f32 %v339, %v403
  %v405 = vpop.f32.mrf.mxu0
  %v406 = vpop.f32.mrf.mxu0
  %v407 = vadd.f32 %v342, %v406
  %v408 = vpop.f32.mrf.mxu0
  %409 = vmatprep.mubr.bf16.mxu0 0
  %410 = vmatmul.mubr.bf16.gmra.mxu0 %v291
  %v411 = vpop.f32.mrf.mxu0
  %v412 = vadd.f32 %v347, %v411
  %v413 = vpop.f32.mrf.mxu0
  %v414 = vpop.f32.mrf.mxu0
  %v415 = vadd.f32 %v350, %v414
  %v416 = vpop.f32.mrf.mxu0
  %417 = vmatprep.mubr.bf16.mxu0 0
  %418 = vmatmul.mubr.bf16.gmra.mxu0 %v294
  %v419 = vpop.f32.mrf.mxu0
  %v420 = vadd.f32 %v355, %v419
  %v421 = vpop.f32.mrf.mxu0
  %v422 = vpop.f32.mrf.mxu0
  %v423 = vadd.f32 %v358, %v422
  %v424 = vpop.f32.mrf.mxu0
  %425 = vdwg.mxu0
  %v426 = vmax.f32 %v396, 0.0
  %v427 = vmax.f32 %v399, 0.0
  %v428 = vmax.f32 %v404, 0.0
  %v429 = vmax.f32 %v407, 0.0
  %v430 = vmax.f32 %v412, 0.0
  %v431 = vmax.f32 %v415, 0.0
  %v432 = vmax.f32 %v420, 0.0
  %v433 = vmax.f32 %v423, 0.0
  %vm434 = vcmask 64512
  %435 = vst.msk [vmem:[%s3] sm:$0xff] %vm434, %v426
  %436 = vst.msk [vmem:[%s3 + $0x8] sm:$0xff] %vm434, %v427
  %437 = vst.msk [vmem:[%s3 + $0x10] sm:$0xff] %vm434, %v428
  %438 = vst.msk [vmem:[%s3 + $0x18] sm:$0xff] %vm434, %v429
  %439 = vst.msk [vmem:[%s3 + $0x20] sm:$0xff] %vm434, %v430
  %440 = vst.msk [vmem:[%s3 + $0x28] sm:$0xff] %vm434, %v431
  %441 = vst.msk [vmem:[%s3 + $0x30] sm:$0xff] %vm434, %v432
  %442 = vst.msk [vmem:[%s3 + $0x38] sm:$0xff] %vm434, %v433
  // Predicated region
  $region14: #{autoencoder_forward.8} parent=0 // pred_check
    _
  $region15: #{autoencoder_forward.8} parent=0 // pred_check_branch
    %444 = sbr.rel (0) target = $region17
  $region16: #{autoencoder_forward.8} parent=0 // pred_region
    _
  $region17: #{autoencoder_forward.8} parent=0 // pred_fallthru
    _
  // Predicated region
  $region18: #{autoencoder_forward.8} parent=0 // pred_check
    _
  $region19: #{autoencoder_forward.8} parent=0 // pred_check_branch
    %446 = sbr.rel (0) target = $region21
  $region20: #{autoencoder_forward.8} parent=0 // pred_region
    _
  $region21: #{autoencoder_forward.8} parent=0 // pred_fallthru
    _

// kernel: autoencoder_forward.9
$region0: #{autoencoder_forward.9}
  #allocation0 [shape = 'u32[]', space=smem, size = 0x4, offset = 0x4, fixed_abs, tag = 'smem constant byte address 0x4 - core index']
  #allocation1 [shape = 'u32[144,128]{1,0:T(1,128)}', space=vmem, size = 0x12000, scoped, tag = 'internal scratch']
  %s0 = inlined_call_operand.vmem [shape: bf16[128,256], index: 0, kind: input, shape index: {}]
  %s1 = inlined_call_operand.vmem [shape: bf16[256,8], index: 1, kind: input, shape index: {}]
  %s2 = inlined_call_operand.vmem [shape: f32[128,1], index: 2, kind: input, shape index: {}]
  %s3 = inlined_call_operand.vmem [shape: f32[128,8], index: 3, kind: output, shape index: {}]
  %s4 = sld [smem:[#allocation0]]
  $region22: #{autoencoder_forward.9} parent=0
    _
  %s6 = ssub.s32 1, %s4
  %s7 = scalar_select 0, %s6, %s4
  // Predicated region
  $region2: #{autoencoder_forward.9} parent=0 // pred_check
    _
  $region3: #{autoencoder_forward.9} parent=0 // pred_check_branch
    %9 = sbr.rel (0) target = $region5
  $region4: #{autoencoder_forward.9} parent=0 // pred_region
    _
  $region5: #{autoencoder_forward.9} parent=0 // pred_fallthru
    _
  // Predicated region
  $region6: #{autoencoder_forward.9} parent=0 // pred_check
    _
  $region7: #{autoencoder_forward.9} parent=0 // pred_check_branch
    %11 = sbr.rel (0) target = $region9
  $region8: #{autoencoder_forward.9} parent=0 // pred_region
    _
  $region9: #{autoencoder_forward.9} parent=0 // pred_fallthru
    _
  // Predicated region
  $region10: #{autoencoder_forward.9} parent=0 // pred_check
    _
  $region11: #{autoencoder_forward.9} parent=0 // pred_check_branch
    %13 = sbr.rel (0) target = $region13
  $region12: #{autoencoder_forward.9} parent=0 // pred_region
    _
  $region13: #{autoencoder_forward.9} parent=0 // pred_fallthru
    _
  %v15 = vld [vmem:[%s0] sm:$0xff]
  %v16 = vld [vmem:[%s0 + $0x8] sm:$0xff]
  %v17 = vld [vmem:[%s0 + $0x10] sm:$0xff]
  %v18 = vld [vmem:[%s0 + $0x18] sm:$0xff]
  %v19 = vld [vmem:[%s0 + $0x20] sm:$0xff]
  %v20 = vld [vmem:[%s0 + $0x28] sm:$0xff]
  %v21 = vld [vmem:[%s0 + $0x30] sm:$0xff]
  %v22 = vld [vmem:[%s0 + $0x38] sm:$0xff]
  %v23 = vld [vmem:[%s0 + $0x40] sm:$0xff]
  %v24 = vld [vmem:[%s0 + $0x48] sm:$0xff]
  %v25 = vld [vmem:[%s0 + $0x50] sm:$0xff]
  %v26 = vld [vmem:[%s0 + $0x58] sm:$0xff]
  %v27 = vld [vmem:[%s0 + $0x60] sm:$0xff]
  %v28 = vld [vmem:[%s0 + $0x68] sm:$0xff]
  %v29 = vld [vmem:[%s0 + $0x70] sm:$0xff]
  %v30 = vld [vmem:[%s0 + $0x78] sm:$0xff]
  %v31 = vld [vmem:[%s1] sm:$0xf]
  %v32 = vld [vmem:[%s1 + $0x4] sm:$0xf]
  %v33 = vld [vmem:[%s1 + $0x8] sm:$0xf]
  %v34 = vld [vmem:[%s1 + $0xc] sm:$0xf]
  %v35 = vld [vmem:[%s1 + $0x10] sm:$0xf]
  %v36 = vld [vmem:[%s1 + $0x14] sm:$0xf]
  %v37 = vld [vmem:[%s1 + $0x18] sm:$0xf]
  %v38 = vld [vmem:[%s1 + $0x1c] sm:$0xf]
  %v39 = vld [vmem:[%s1 + $0x20] sm:$0xf]
  %v40 = vld [vmem:[%s1 + $0x24] sm:$0xf]
  %v41 = vld [vmem:[%s1 + $0x28] sm:$0xf]
  %v42 = vld [vmem:[%s1 + $0x2c] sm:$0xf]
  %v43 = vld [vmem:[%s1 + $0x30] sm:$0xf]
  %v44 = vld [vmem:[%s1 + $0x34] sm:$0xf]
  %v45 = vld [vmem:[%s1 + $0x38] sm:$0xf]
  %v46 = vld [vmem:[%s1 + $0x3c] sm:$0xf]
  %v47 = vld [vmem:[%s1 + $0x40] sm:$0xf]
  %v48 = vld [vmem:[%s1 + $0x44] sm:$0xf]
  %v49 = vld [vmem:[%s1 + $0x48] sm:$0xf]
  %v50 = vld [vmem:[%s1 + $0x4c] sm:$0xf]
  %v51 = vld [vmem:[%s1 + $0x50] sm:$0xf]
  %v52 = vld [vmem:[%s1 + $0x54] sm:$0xf]
  %v53 = vld [vmem:[%s1 + $0x58] sm:$0xf]
  %v54 = vld [vmem:[%s1 + $0x5c] sm:$0xf]
  %v55 = vld [vmem:[%s1 + $0x60] sm:$0xf]
  %v56 = vld [vmem:[%s1 + $0x64] sm:$0xf]
  %v57 = vld [vmem:[%s1 + $0x68] sm:$0xf]
  %v58 = vld [vmem:[%s1 + $0x6c] sm:$0xf]
  %v59 = vld [vmem:[%s1 + $0x70] sm:$0xf]
  %v60 = vld [vmem:[%s1 + $0x74] sm:$0xf]
  %v61 = vld [vmem:[%s1 + $0x78] sm:$0xf]
  %v62 = vld [vmem:[%s1 + $0x7c] sm:$0xf]
  %v63 = vld [vmem:[%s2] sm:$0xff]
  %v64 = vld [vmem:[%s2 + $0x8] sm:$0xff]
  %v65 = vld [vmem:[%s2 + $0x10] sm:$0xff]
  %v66 = vld [vmem:[%s2 + $0x18] sm:$0xff]
  %v67 = vld [vmem:[%s2 + $0x20] sm:$0xff]
  %v68 = vld [vmem:[%s2 + $0x28] sm:$0xff]
  %v69 = vld [vmem:[%s2 + $0x30] sm:$0xff]
  %v70 = vld [vmem:[%s2 + $0x38] sm:$0xff]
  %v71 = vld [vmem:[%s2 + $0x40] sm:$0xff]
  %v72 = vld [vmem:[%s2 + $0x48] sm:$0xff]
  %v73 = vld [vmem:[%s2 + $0x50] sm:$0xff]
  %v74 = vld [vmem:[%s2 + $0x58] sm:$0xff]
  %v75 = vld [vmem:[%s2 + $0x60] sm:$0xff]
  %v76 = vld [vmem:[%s2 + $0x68] sm:$0xff]
  %v77 = vld [vmem:[%s2 + $0x70] sm:$0xff]
  %v78 = vld [vmem:[%s2 + $0x78] sm:$0xff]
  %80 = vset.pattern.permute.xlu0 0
  %81 = vperm.xlu0 %80, %v63
  %v82 = vpop.permute.xlu0 %81
  %85 = vset.pattern.permute.xlu0 0
  %86 = vperm.xlu0 %85, %v64
  %v87 = vpop.permute.xlu0 %86
  %90 = vset.pattern.permute.xlu0 0
  %91 = vperm.xlu0 %90, %v65
  %v92 = vpop.permute.xlu0 %91
  %95 = vset.pattern.permute.xlu0 0
  %96 = vperm.xlu0 %95, %v66
  %v97 = vpop.permute.xlu0 %96
  %100 = vset.pattern.permute.xlu0 0
  %101 = vperm.xlu0 %100, %v67
  %v102 = vpop.permute.xlu0 %101
  %105 = vset.pattern.permute.xlu0 0
  %106 = vperm.xlu0 %105, %v68
  %v107 = vpop.permute.xlu0 %106
  %110 = vset.pattern.permute.xlu0 0
  %111 = vperm.xlu0 %110, %v69
  %v112 = vpop.permute.xlu0 %111
  %115 = vset.pattern.permute.xlu0 0
  %116 = vperm.xlu0 %115, %v70
  %v117 = vpop.permute.xlu0 %116
  %120 = vset.pattern.permute.xlu0 0
  %121 = vperm.xlu0 %120, %v71
  %v122 = vpop.permute.xlu0 %121
  %125 = vset.pattern.permute.xlu0 0
  %126 = vperm.xlu0 %125, %v72
  %v127 = vpop.permute.xlu0 %126
  %130 = vset.pattern.permute.xlu0 0
  %131 = vperm.xlu0 %130, %v73
  %v132 = vpop.permute.xlu0 %131
  %135 = vset.pattern.permute.xlu0 0
  %136 = vperm.xlu0 %135, %v74
  %v137 = vpop.permute.xlu0 %136
  %140 = vset.pattern.permute.xlu0 0
  %141 = vperm.xlu0 %140, %v75
  %v142 = vpop.permute.xlu0 %141
  %145 = vset.pattern.permute.xlu0 0
  %146 = vperm.xlu0 %145, %v76
  %v147 = vpop.permute.xlu0 %146
  %150 = vset.pattern.permute.xlu0 0
  %151 = vperm.xlu0 %150, %v77
  %v152 = vpop.permute.xlu0 %151
  %155 = vset.pattern.permute.xlu0 0
  %156 = vperm.xlu0 %155, %v78
  %v157 = vpop.permute.xlu0 %156
  %v175 = vunpack.c.l.b16 %v15
  %v176 = vunpack.c.h.b16 %v15
  %v177 = vunpack.c.l.b16 %v16
  %v178 = vunpack.c.h.b16 %v16
  %v179 = vunpack.c.l.b16 %v17
  %v180 = vunpack.c.h.b16 %v17
  %v181 = vunpack.c.l.b16 %v18
  %v182 = vunpack.c.h.b16 %v18
  %v183 = vunpack.c.l.b16 %v19
  %v184 = vunpack.c.h.b16 %v19
  %v185 = vunpack.c.l.b16 %v20
  %v186 = vunpack.c.h.b16 %v20
  %v187 = vunpack.c.l.b16 %v21
  %v188 = vunpack.c.h.b16 %v21
  %v189 = vunpack.c.l.b16 %v22
  %v190 = vunpack.c.h.b16 %v22
  %v191 = vunpack.c.l.b16 %v23
  %v192 = vunpack.c.h.b16 %v23
  %v193 = vunpack.c.l.b16 %v24
  %v194 = vunpack.c.h.b16 %v24
  %v195 = vunpack.c.l.b16 %v25
  %v196 = vunpack.c.h.b16 %v25
  %v197 = vunpack.c.l.b16 %v26
  %v198 = vunpack.c.h.b16 %v26
  %v199 = vunpack.c.l.b16 %v27
  %v200 = vunpack.c.h.b16 %v27
  %v201 = vunpack.c.l.b16 %v28
  %v202 = vunpack.c.h.b16 %v28
  %v203 = vunpack.c.l.b16 %v29
  %v204 = vunpack.c.h.b16 %v29
  %v205 = vunpack.c.l.b16 %v30
  %v206 = vunpack.c.h.b16 %v30
  %v207 = vpack.c.b16 %v177, %v175
  %v208 = vpack.c.b16 %v178, %v176
  %v209 = vpack.c.b16 %v181, %v179
  %v210 = vpack.c.b16 %v182, %v180
  %v211 = vpack.c.b16 %v185, %v183
  %v212 = vpack.c.b16 %v186, %v184
  %v213 = vpack.c.b16 %v189, %v187
  %v214 = vpack.c.b16 %v190, %v188
  %v215 = vpack.c.b16 %v193, %v191
  %v216 = vpack.c.b16 %v194, %v192
  %v217 = vpack.c.b16 %v197, %v195
  %v218 = vpack.c.b16 %v198, %v196
  %v219 = vpack.c.b16 %v201, %v199
  %v220 = vpack.c.b16 %v202, %v200
  %v221 = vpack.c.b16 %v205, %v203
  %v222 = vpack.c.b16 %v206, %v204
  %v271 = vunpack.c.l.b16 %v31
  %v272 = vunpack.c.l.b16 %v32
  %v273 = vunpack.c.l.b16 %v33
  %v274 = vunpack.c.l.b16 %v34
  %v275 = vunpack.c.l.b16 %v35
  %v276 = vunpack.c.l.b16 %v36
  %v277 = vunpack.c.l.b16 %v37
  %v278 = vunpack.c.l.b16 %v38
  %v279 = vunpack.c.l.b16 %v39
  %v280 = vunpack.c.l.b16 %v40
  %v281 = vunpack.c.l.b16 %v41
  %v282 = vunpack.c.l.b16 %v42
  %v283 = vunpack.c.l.b16 %v43
  %v284 = vunpack.c.l.b16 %v44
  %v285 = vunpack.c.l.b16 %v45
  %v286 = vunpack.c.l.b16 %v46
  %v287 = vunpack.c.l.b16 %v47
  %v288 = vunpack.c.l.b16 %v48
  %v289 = vunpack.c.l.b16 %v49
  %v290 = vunpack.c.l.b16 %v50
  %v291 = vunpack.c.l.b16 %v51
  %v292 = vunpack.c.l.b16 %v52
  %v293 = vunpack.c.l.b16 %v53
  %v294 = vunpack.c.l.b16 %v54
  %v295 = vunpack.c.l.b16 %v55
  %v296 = vunpack.c.l.b16 %v56
  %v297 = vunpack.c.l.b16 %v57
  %v298 = vunpack.c.l.b16 %v58
  %v299 = vunpack.c.l.b16 %v59
  %v300 = vunpack.c.l.b16 %v60
  %v301 = vunpack.c.l.b16 %v61
  %v302 = vunpack.c.l.b16 %v62
  %v303 = vpack.c.b16 %v272, %v271
  %v304 = vpack.c.b16 %v274, %v273
  %v305 = vpack.c.b16 %v276, %v275
  %v306 = vpack.c.b16 %v278, %v277
  %v307 = vpack.c.b16 %v280, %v279
  %v308 = vpack.c.b16 %v282, %v281
  %v309 = vpack.c.b16 %v284, %v283
  %v310 = vpack.c.b16 %v286, %v285
  %v311 = vpack.c.b16 %v288, %v287
  %v312 = vpack.c.b16 %v290, %v289
  %v313 = vpack.c.b16 %v292, %v291
  %v314 = vpack.c.b16 %v294, %v293
  %v315 = vpack.c.b16 %v296, %v295
  %v316 = vpack.c.b16 %v298, %v297
  %v317 = vpack.c.b16 %v300, %v299
  %v318 = vpack.c.b16 %v302, %v301
  %335 = vmatprep.subr.bf16.mxu0 0
  %336 = vmatpush1.bf16.msra.mxu0 %v310
  %337 = vmatprep.subr.bf16.mxu0 0
  %338 = vmatpush1.bf16.msra.mxu0 %v309
  %339 = vmatprep.subr.bf16.mxu0 0
  %340 = vmatpush1.bf16.msra.mxu0 %v308
  %341 = vmatprep.subr.bf16.mxu0 0
  %342 = vmatpush1.bf16.msra.mxu0 %v307
  %343 = vmatprep.subr.bf16.mxu0 0
  %344 = vmatpush1.bf16.msra.mxu0 %v306
  %345 = vmatprep.subr.bf16.mxu0 0
  %346 = vmatpush1.bf16.msra.mxu0 %v305
  %347 = vmatprep.subr.bf16.mxu0 0
  %348 = vmatpush1.bf16.msra.mxu0 %v304
  %349 = vmatprep.subr.bf16.mxu0 0
  %350 = vmatpush1.bf16.msra.mxu0 %v303
  %351 = vmatprep.subr.bf16.mxu0 0
  %352 = vmatpush2.bf16.msra.mxu0 %v318
  %353 = vmatprep.subr.bf16.mxu0 0
  %354 = vmatpush2.bf16.msra.mxu0 %v317
  %355 = vmatprep.subr.bf16.mxu0 0
  %356 = vmatpush2.bf16.msra.mxu0 %v316
  %357 = vmatprep.subr.bf16.mxu0 0
  %358 = vmatpush2.bf16.msra.mxu0 %v315
  %359 = vmatprep.subr.bf16.mxu0 0
  %360 = vmatpush2.bf16.msra.mxu0 %v314
  %361 = vmatprep.subr.bf16.mxu0 0
  %362 = vmatpush2.bf16.msra.mxu0 %v313
  %363 = vmatprep.subr.bf16.mxu0 0
  %364 = vmatpush2.bf16.msra.mxu0 %v312
  %365 = vmatprep.subr.bf16.mxu0 0
  %366 = vmatpush2.bf16.msra.mxu0 %v311
  %367 = vmatprep.mubr.bf16.mxu0 %v208
  %368 = vmatmul.mubr.bf16.gmra.mxu0 %v207
  %v369 = vpop.f32.mrf.mxu0
  %v370 = vadd.f32 %v82, %v369
  %v371 = vpop.f32.mrf.mxu0
  %v372 = vpop.f32.mrf.mxu0
  %v373 = vadd.f32 %v87, %v372
  %v374 = vpop.f32.mrf.mxu0
  %375 = vmatprep.mubr.bf16.mxu0 %v210
  %376 = vmatmul.mubr.bf16.gmra.mxu0 %v209
  %v377 = vpop.f32.mrf.mxu0
  %v378 = vadd.f32 %v92, %v377
  %v379 = vpop.f32.mrf.mxu0
  %v380 = vpop.f32.mrf.mxu0
  %v381 = vadd.f32 %v97, %v380
  %v382 = vpop.f32.mrf.mxu0
  %383 = vmatprep.mubr.bf16.mxu0 %v212
  %384 = vmatmul.mubr.bf16.gmra.mxu0 %v211
  %v385 = vpop.f32.mrf.mxu0
  %v386 = vadd.f32 %v102, %v385
  %v387 = vpop.f32.mrf.mxu0
  %v388 = vpop.f32.mrf.mxu0
  %v389 = vadd.f32 %v107, %v388
  %v390 = vpop.f32.mrf.mxu0
  %391 = vmatprep.mubr.bf16.mxu0 %v214
  %392 = vmatmul.mubr.bf16.gmra.mxu0 %v213
  %v393 = vpop.f32.mrf.mxu0
  %v394 = vadd.f32 %v112, %v393
  %v395 = vpop.f32.mrf.mxu0
  %v396 = vpop.f32.mrf.mxu0
  %v397 = vadd.f32 %v117, %v396
  %v398 = vpop.f32.mrf.mxu0
  %399 = vmatprep.mubr.bf16.mxu0 %v216
  %400 = vmatmul.mubr.bf16.gmra.mxu0 %v215
  %v401 = vpop.f32.mrf.mxu0
  %v402 = vadd.f32 %v122, %v401
  %v403 = vpop.f32.mrf.mxu0
  %v404 = vpop.f32.mrf.mxu0
  %v405 = vadd.f32 %v127, %v404
  %v406 = vpop.f32.mrf.mxu0
  %407 = vmatprep.mubr.bf16.mxu0 %v218
  %408 = vmatmul.mubr.bf16.gmra.mxu0 %v217
  %v409 = vpop.f32.mrf.mxu0
  %v410 = vadd.f32 %v132, %v409
  %v411 = vpop.f32.mrf.mxu0
  %v412 = vpop.f32.mrf.mxu0
  %v413 = vadd.f32 %v137, %v412
  %v414 = vpop.f32.mrf.mxu0
  %415 = vmatprep.mubr.bf16.mxu0 %v220
  %416 = vmatmul.mubr.bf16.gmra.mxu0 %v219
  %v417 = vpop.f32.mrf.mxu0
  %v418 = vadd.f32 %v142, %v417
  %v419 = vpop.f32.mrf.mxu0
  %v420 = vpop.f32.mrf.mxu0
  %v421 = vadd.f32 %v147, %v420
  %v422 = vpop.f32.mrf.mxu0
  %423 = vmatprep.mubr.bf16.mxu0 %v222
  %424 = vmatmul.mubr.bf16.gmra.mxu0 %v221
  %v425 = vpop.f32.mrf.mxu0
  %v426 = vadd.f32 %v152, %v425
  %v427 = vpop.f32.mrf.mxu0
  %v428 = vpop.f32.mrf.mxu0
  %v429 = vadd.f32 %v157, %v428
  %v430 = vpop.f32.mrf.mxu0
  %431 = vdwg.mxu0
  %v432 = vmax.f32 %v370, 0.0
  %v433 = vmax.f32 %v373, 0.0
  %v434 = vmax.f32 %v378, 0.0
  %v435 = vmax.f32 %v381, 0.0
  %v436 = vmax.f32 %v386, 0.0
  %v437 = vmax.f32 %v389, 0.0
  %v438 = vmax.f32 %v394, 0.0
  %v439 = vmax.f32 %v397, 0.0
  %v440 = vmax.f32 %v402, 0.0
  %v441 = vmax.f32 %v405, 0.0
  %v442 = vmax.f32 %v410, 0.0
  %v443 = vmax.f32 %v413, 0.0
  %v444 = vmax.f32 %v418, 0.0
  %v445 = vmax.f32 %v421, 0.0
  %v446 = vmax.f32 %v426, 0.0
  %v447 = vmax.f32 %v429, 0.0
  %vm448 = vcmask 64512
  %449 = vst.msk [vmem:[%s3] sm:$0xff] %vm448, %v432
  %450 = vst.msk [vmem:[%s3 + $0x8] sm:$0xff] %vm448, %v433
  %451 = vst.msk [vmem:[%s3 + $0x10] sm:$0xff] %vm448, %v434
  %452 = vst.msk [vmem:[%s3 + $0x18] sm:$0xff] %vm448, %v435
  %453 = vst.msk [vmem:[%s3 + $0x20] sm:$0xff] %vm448, %v436
  %454 = vst.msk [vmem:[%s3 + $0x28] sm:$0xff] %vm448, %v437
  %455 = vst.msk [vmem:[%s3 + $0x30] sm:$0xff] %vm448, %v438
  %456 = vst.msk [vmem:[%s3 + $0x38] sm:$0xff] %vm448, %v439
  %457 = vst.msk [vmem:[%s3 + $0x40] sm:$0xff] %vm448, %v440
  %458 = vst.msk [vmem:[%s3 + $0x48] sm:$0xff] %vm448, %v441
  %459 = vst.msk [vmem:[%s3 + $0x50] sm:$0xff] %vm448, %v442
  %460 = vst.msk [vmem:[%s3 + $0x58] sm:$0xff] %vm448, %v443
  %461 = vst.msk [vmem:[%s3 + $0x60] sm:$0xff] %vm448, %v444
  %462 = vst.msk [vmem:[%s3 + $0x68] sm:$0xff] %vm448, %v445
  %463 = vst.msk [vmem:[%s3 + $0x70] sm:$0xff] %vm448, %v446
  %464 = vst.msk [vmem:[%s3 + $0x78] sm:$0xff] %vm448, %v447
  // Predicated region
  $region14: #{autoencoder_forward.9} parent=0 // pred_check
    _
  $region15: #{autoencoder_forward.9} parent=0 // pred_check_branch
    %466 = sbr.rel (0) target = $region17
  $region16: #{autoencoder_forward.9} parent=0 // pred_region
    _
  $region17: #{autoencoder_forward.9} parent=0 // pred_fallthru
    _
  // Predicated region
  $region18: #{autoencoder_forward.9} parent=0 // pred_check
    _
  $region19: #{autoencoder_forward.9} parent=0 // pred_check_branch
    %468 = sbr.rel (0) target = $region21
  $region20: #{autoencoder_forward.9} parent=0 // pred_region
    _
  $region21: #{autoencoder_forward.9} parent=0 // pred_fallthru
    _

// kernel: autoencoder_forward.10
$region0: #{autoencoder_forward.10}
  #allocation0 [shape = 'u32[]', space=smem, size = 0x4, offset = 0x4, fixed_abs, tag = 'smem constant byte address 0x4 - core index']
  #allocation1 [shape = 'u32[144,128]{1,0:T(1,128)}', space=vmem, size = 0x12000, scoped, tag = 'internal scratch']
  %s0 = inlined_call_operand.vmem [shape: bf16[64,128], index: 0, kind: input, shape index: {}]
  %s1 = inlined_call_operand.vmem [shape: bf16[128,32], index: 1, kind: input, shape index: {}]
  %s2 = inlined_call_operand.vmem [shape: f32[64,1], index: 2, kind: input, shape index: {}]
  %s3 = inlined_call_operand.vmem [shape: f32[64,32], index: 3, kind: output, shape index: {}]
  %s4 = sld [smem:[#allocation0]]
  $region22: #{autoencoder_forward.10} parent=0
    _
  %s6 = ssub.s32 1, %s4
  %s7 = scalar_select 0, %s6, %s4
  // Predicated region
  $region2: #{autoencoder_forward.10} parent=0 // pred_check
    _
  $region3: #{autoencoder_forward.10} parent=0 // pred_check_branch
    %9 = sbr.rel (0) target = $region5
  $region4: #{autoencoder_forward.10} parent=0 // pred_region
    _
  $region5: #{autoencoder_forward.10} parent=0 // pred_fallthru
    _
  // Predicated region
  $region6: #{autoencoder_forward.10} parent=0 // pred_check
    _
  $region7: #{autoencoder_forward.10} parent=0 // pred_check_branch
    %11 = sbr.rel (0) target = $region9
  $region8: #{autoencoder_forward.10} parent=0 // pred_region
    _
  $region9: #{autoencoder_forward.10} parent=0 // pred_fallthru
    _
  // Predicated region
  $region10: #{autoencoder_forward.10} parent=0 // pred_check
    _
  $region11: #{autoencoder_forward.10} parent=0 // pred_check_branch
    %13 = sbr.rel (0) target = $region13
  $region12: #{autoencoder_forward.10} parent=0 // pred_region
    _
  $region13: #{autoencoder_forward.10} parent=0 // pred_fallthru
    _
  %v15 = vld [vmem:[%s0] sm:$0xf]
  %v16 = vld [vmem:[%s0 + $0x4] sm:$0xf]
  %v17 = vld [vmem:[%s0 + $0x8] sm:$0xf]
  %v18 = vld [vmem:[%s0 + $0xc] sm:$0xf]
  %v19 = vld [vmem:[%s0 + $0x10] sm:$0xf]
  %v20 = vld [vmem:[%s0 + $0x14] sm:$0xf]
  %v21 = vld [vmem:[%s0 + $0x18] sm:$0xf]
  %v22 = vld [vmem:[%s0 + $0x1c] sm:$0xf]
  %v23 = vld [vmem:[%s1] sm:$0xf]
  %v24 = vld [vmem:[%s1 + $0x4] sm:$0xf]
  %v25 = vld [vmem:[%s1 + $0x8] sm:$0xf]
  %v26 = vld [vmem:[%s1 + $0xc] sm:$0xf]
  %v27 = vld [vmem:[%s1 + $0x10] sm:$0xf]
  %v28 = vld [vmem:[%s1 + $0x14] sm:$0xf]
  %v29 = vld [vmem:[%s1 + $0x18] sm:$0xf]
  %v30 = vld [vmem:[%s1 + $0x1c] sm:$0xf]
  %v31 = vld [vmem:[%s1 + $0x20] sm:$0xf]
  %v32 = vld [vmem:[%s1 + $0x24] sm:$0xf]
  %v33 = vld [vmem:[%s1 + $0x28] sm:$0xf]
  %v34 = vld [vmem:[%s1 + $0x2c] sm:$0xf]
  %v35 = vld [vmem:[%s1 + $0x30] sm:$0xf]
  %v36 = vld [vmem:[%s1 + $0x34] sm:$0xf]
  %v37 = vld [vmem:[%s1 + $0x38] sm:$0xf]
  %v38 = vld [vmem:[%s1 + $0x3c] sm:$0xf]
  %v39 = vld [vmem:[%s2] sm:$0xff]
  %v40 = vld [vmem:[%s2 + $0x8] sm:$0xff]
  %v41 = vld [vmem:[%s2 + $0x10] sm:$0xff]
  %v42 = vld [vmem:[%s2 + $0x18] sm:$0xff]
  %v43 = vld [vmem:[%s2 + $0x20] sm:$0xff]
  %v44 = vld [vmem:[%s2 + $0x28] sm:$0xff]
  %v45 = vld [vmem:[%s2 + $0x30] sm:$0xff]
  %v46 = vld [vmem:[%s2 + $0x38] sm:$0xff]
  %48 = vset.pattern.permute.xlu0 0
  %49 = vperm.xlu0 %48, %v39
  %v50 = vpop.permute.xlu0 %49
  %53 = vset.pattern.permute.xlu0 0
  %54 = vperm.xlu0 %53, %v40
  %v55 = vpop.permute.xlu0 %54
  %58 = vset.pattern.permute.xlu0 0
  %59 = vperm.xlu0 %58, %v41
  %v60 = vpop.permute.xlu0 %59
  %63 = vset.pattern.permute.xlu0 0
  %64 = vperm.xlu0 %63, %v42
  %v65 = vpop.permute.xlu0 %64
  %68 = vset.pattern.permute.xlu0 0
  %69 = vperm.xlu0 %68, %v43
  %v70 = vpop.permute.xlu0 %69
  %73 = vset.pattern.permute.xlu0 0
  %74 = vperm.xlu0 %73, %v44
  %v75 = vpop.permute.xlu0 %74
  %78 = vset.pattern.permute.xlu0 0
  %79 = vperm.xlu0 %78, %v45
  %v80 = vpop.permute.xlu0 %79
  %83 = vset.pattern.permute.xlu0 0
  %84 = vperm.xlu0 %83, %v46
  %v85 = vpop.permute.xlu0 %84
  %v95 = vunpack.c.l.b16 %v15
  %v96 = vunpack.c.l.b16 %v16
  %v97 = vunpack.c.l.b16 %v17
  %v98 = vunpack.c.l.b16 %v18
  %v99 = vunpack.c.l.b16 %v19
  %v100 = vunpack.c.l.b16 %v20
  %v101 = vunpack.c.l.b16 %v21
  %v102 = vunpack.c.l.b16 %v22
  %v103 = vpack.c.b16 %v96, %v95
  %v104 = vpack.c.b16 %v98, %v97
  %v105 = vpack.c.b16 %v100, %v99
  %v106 = vpack.c.b16 %v102, %v101
  %v127 = vunpack.c.l.b16 %v23
  %v128 = vunpack.c.l.b16 %v24
  %v129 = vunpack.c.l.b16 %v25
  %v130 = vunpack.c.l.b16 %v26
  %v131 = vunpack.c.l.b16 %v27
  %v132 = vunpack.c.l.b16 %v28
  %v133 = vunpack.c.l.b16 %v29
  %v134 = vunpack.c.l.b16 %v30
  %v135 = vunpack.c.l.b16 %v31
  %v136 = vunpack.c.l.b16 %v32
  %v137 = vunpack.c.l.b16 %v33
  %v138 = vunpack.c.l.b16 %v34
  %v139 = vunpack.c.l.b16 %v35
  %v140 = vunpack.c.l.b16 %v36
  %v141 = vunpack.c.l.b16 %v37
  %v142 = vunpack.c.l.b16 %v38
  %v143 = vpack.c.b16 %v128, %v127
  %v144 = vpack.c.b16 %v130, %v129
  %v145 = vpack.c.b16 %v132, %v131
  %v146 = vpack.c.b16 %v134, %v133
  %v147 = vpack.c.b16 %v136, %v135
  %v148 = vpack.c.b16 %v138, %v137
  %v149 = vpack.c.b16 %v140, %v139
  %v150 = vpack.c.b16 %v142, %v141
  %159 = vmatprep.subr.bf16.mxu0 0
  %160 = vmatpush1.bf16.msra.mxu0 %v150
  %161 = vmatprep.subr.bf16.mxu0 0
  %162 = vmatpush1.bf16.msra.mxu0 %v149
  %163 = vmatprep.subr.bf16.mxu0 0
  %164 = vmatpush1.bf16.msra.mxu0 %v148
  %165 = vmatprep.subr.bf16.mxu0 0
  %166 = vmatpush1.bf16.msra.mxu0 %v147
  %167 = vmatprep.subr.bf16.mxu0 0
  %168 = vmatpush1.bf16.msra.mxu0 %v146
  %169 = vmatprep.subr.bf16.mxu0 0
  %170 = vmatpush1.bf16.msra.mxu0 %v145
  %171 = vmatprep.subr.bf16.mxu0 0
  %172 = vmatpush1.bf16.msra.mxu0 %v144
  %173 = vmatprep.subr.bf16.mxu0 0
  %174 = vmatpush1.bf16.msra.mxu0 %v143
  %175 = vmatprep.subr.bf16.mxu0 0
  %176 = vmatpush2.bf16.msra.mxu0 0
  %177 = vmatprep.subr.bf16.mxu0 0
  %178 = vmatpush2.bf16.msra.mxu0 0
  %179 = vmatprep.subr.bf16.mxu0 0
  %180 = vmatpush2.bf16.msra.mxu0 0
  %181 = vmatprep.subr.bf16.mxu0 0
  %182 = vmatpush2.bf16.msra.mxu0 0
  %183 = vmatprep.subr.bf16.mxu0 0
  %184 = vmatpush2.bf16.msra.mxu0 0
  %185 = vmatprep.subr.bf16.mxu0 0
  %186 = vmatpush2.bf16.msra.mxu0 0
  %187 = vmatprep.subr.bf16.mxu0 0
  %188 = vmatpush2.bf16.msra.mxu0 0
  %189 = vmatprep.subr.bf16.mxu0 0
  %190 = vmatpush2.bf16.msra.mxu0 0
  %191 = vmatprep.mubr.bf16.mxu0 0
  %192 = vmatmul.mubr.bf16.gmra.mxu0 %v103
  %v193 = vpop.f32.mrf.mxu0
  %v194 = vadd.f32 %v50, %v193
  %v195 = vpop.f32.mrf.mxu0
  %v196 = vpop.f32.mrf.mxu0
  %v197 = vadd.f32 %v55, %v196
  %v198 = vpop.f32.mrf.mxu0
  %199 = vmatprep.mubr.bf16.mxu0 0
  %200 = vmatmul.mubr.bf16.gmra.mxu0 %v104
  %v201 = vpop.f32.mrf.mxu0
  %v202 = vadd.f32 %v60, %v201
  %v203 = vpop.f32.mrf.mxu0
  %v204 = vpop.f32.mrf.mxu0
  %v205 = vadd.f32 %v65, %v204
  %v206 = vpop.f32.mrf.mxu0
  %207 = vmatprep.mubr.bf16.mxu0 0
  %208 = vmatmul.mubr.bf16.gmra.mxu0 %v105
  %v209 = vpop.f32.mrf.mxu0
  %v210 = vadd.f32 %v70, %v209
  %v211 = vpop.f32.mrf.mxu0
  %v212 = vpop.f32.mrf.mxu0
  %v213 = vadd.f32 %v75, %v212
  %v214 = vpop.f32.mrf.mxu0
  %215 = vmatprep.mubr.bf16.mxu0 0
  %216 = vmatmul.mubr.bf16.gmra.mxu0 %v106
  %v217 = vpop.f32.mrf.mxu0
  %v218 = vadd.f32 %v80, %v217
  %v219 = vpop.f32.mrf.mxu0
  %v220 = vpop.f32.mrf.mxu0
  %v221 = vadd.f32 %v85, %v220
  %v222 = vpop.f32.mrf.mxu0
  %223 = vdwg.mxu0
  %v224 = vmax.f32 %v194, 0.0
  %v225 = vmax.f32 %v197, 0.0
  %v226 = vmax.f32 %v202, 0.0
  %v227 = vmax.f32 %v205, 0.0
  %v228 = vmax.f32 %v210, 0.0
  %v229 = vmax.f32 %v213, 0.0
  %v230 = vmax.f32 %v218, 0.0
  %v231 = vmax.f32 %v221, 0.0
  %vm232 = vcmask 261120
  %233 = vst.msk [vmem:[%s3] sm:$0xff] %vm232, %v224
  %234 = vst.msk [vmem:[%s3 + $0x8] sm:$0xff] %vm232, %v225
  %235 = vst.msk [vmem:[%s3 + $0x10] sm:$0xff] %vm232, %v226
  %236 = vst.msk [vmem:[%s3 + $0x18] sm:$0xff] %vm232, %v227
  %237 = vst.msk [vmem:[%s3 + $0x20] sm:$0xff] %vm232, %v228
  %238 = vst.msk [vmem:[%s3 + $0x28] sm:$0xff] %vm232, %v229
  %239 = vst.msk [vmem:[%s3 + $0x30] sm:$0xff] %vm232, %v230
  %240 = vst.msk [vmem:[%s3 + $0x38] sm:$0xff] %vm232, %v231
  // Predicated region
  $region14: #{autoencoder_forward.10} parent=0 // pred_check
    _
  $region15: #{autoencoder_forward.10} parent=0 // pred_check_branch
    %242 = sbr.rel (0) target = $region17
  $region16: #{autoencoder_forward.10} parent=0 // pred_region
    _
  $region17: #{autoencoder_forward.10} parent=0 // pred_fallthru
    _
  // Predicated region
  $region18: #{autoencoder_forward.10} parent=0 // pred_check
    _
  $region19: #{autoencoder_forward.10} parent=0 // pred_check_branch
    %244 = sbr.rel (0) target = $region21
  $region20: #{autoencoder_forward.10} parent=0 // pred_region
    _
  $region21: #{autoencoder_forward.10} parent=0 // pred_fallthru
    _

// kernel: autoencoder_forward.11
$region0: #{autoencoder_forward.11}
  #allocation0 [shape = 'u32[]', space=smem, size = 0x4, offset = 0x4, fixed_abs, tag = 'smem constant byte address 0x4 - core index']
  #allocation1 [shape = 'u32[144,128]{1,0:T(1,128)}', space=vmem, size = 0x12000, scoped, tag = 'internal scratch']
  %s0 = inlined_call_operand.vmem [shape: bf16[12,64], index: 0, kind: input, shape index: {}]
  %s1 = inlined_call_operand.vmem [shape: bf16[64,128], index: 1, kind: input, shape index: {}]
  %s2 = inlined_call_operand.vmem [shape: f32[12,1], index: 2, kind: input, shape index: {}]
  %s3 = inlined_call_operand.vmem [shape: f32[12,128], index: 3, kind: output, shape index: {}]
  %s4 = sld [smem:[#allocation0]]
  $region22: #{autoencoder_forward.11} parent=0
    _
  %s6 = ssub.s32 1, %s4
  %s7 = scalar_select 0, %s6, %s4
  // Predicated region
  $region2: #{autoencoder_forward.11} parent=0 // pred_check
    _
  $region3: #{autoencoder_forward.11} parent=0 // pred_check_branch
    %9 = sbr.rel (0) target = $region5
  $region4: #{autoencoder_forward.11} parent=0 // pred_region
    _
  $region5: #{autoencoder_forward.11} parent=0 // pred_fallthru
    _
  // Predicated region
  $region6: #{autoencoder_forward.11} parent=0 // pred_check
    _
  $region7: #{autoencoder_forward.11} parent=0 // pred_check_branch
    %11 = sbr.rel (0) target = $region9
  $region8: #{autoencoder_forward.11} parent=0 // pred_region
    _
  $region9: #{autoencoder_forward.11} parent=0 // pred_fallthru
    _
  // Predicated region
  $region10: #{autoencoder_forward.11} parent=0 // pred_check
    _
  $region11: #{autoencoder_forward.11} parent=0 // pred_check_branch
    %13 = sbr.rel (0) target = $region13
  $region12: #{autoencoder_forward.11} parent=0 // pred_region
    _
  $region13: #{autoencoder_forward.11} parent=0 // pred_fallthru
    _
  %v15 = vld [vmem:[%s0] sm:$0xf]
  %v16 = vld [vmem:[%s0 + $0x4] sm:$0x3]
  %v17 = vld [vmem:[%s1] sm:$0xf]
  %v18 = vld [vmem:[%s1 + $0x4] sm:$0xf]
  %v19 = vld [vmem:[%s1 + $0x8] sm:$0xf]
  %v20 = vld [vmem:[%s1 + $0xc] sm:$0xf]
  %v21 = vld [vmem:[%s1 + $0x10] sm:$0xf]
  %v22 = vld [vmem:[%s1 + $0x14] sm:$0xf]
  %v23 = vld [vmem:[%s1 + $0x18] sm:$0xf]
  %v24 = vld [vmem:[%s1 + $0x1c] sm:$0xf]
  %v25 = vld [vmem:[%s2] sm:$0xff]
  %v26 = vld [vmem:[%s2 + $0x8] sm:$0xf]
  %28 = vset.pattern.permute.xlu0 0
  %29 = vperm.xlu0 %28, %v25
  %v30 = vpop.permute.xlu0 %29
  %33 = vset.pattern.permute.xlu0 0
  %34 = vperm.xlu0 %33, %v26
  %v35 = vpop.permute.xlu0 %34
  %v39 = vunpack.c.l.b16 %v15
  %v40 = vunpack.c.l.b16 %v16
  %v41 = vpack.c.b16 %v40, %v39
  %v50 = vunpack.c.l.b16 %v17
  %v51 = vunpack.c.l.b16 %v18
  %v52 = vunpack.c.l.b16 %v19
  %v53 = vunpack.c.l.b16 %v20
  %v54 = vunpack.c.l.b16 %v21
  %v55 = vunpack.c.l.b16 %v22
  %v56 = vunpack.c.l.b16 %v23
  %v57 = vunpack.c.l.b16 %v24
  %v58 = vpack.c.b16 %v51, %v50
  %v59 = vpack.c.b16 %v53, %v52
  %v60 = vpack.c.b16 %v55, %v54
  %v61 = vpack.c.b16 %v57, %v56
  %vm66 = vcmask 523264
  %v68 = vsel %vm66, %v41, 0
  %70 = vmatprep.subr.bf16.mxu0 0
  %71 = vmatpush1.bf16.msra.mxu0 0
  %72 = vmatprep.subr.bf16.mxu0 0
  %73 = vmatpush1.bf16.msra.mxu0 0
  %74 = vmatprep.subr.bf16.mxu0 0
  %75 = vmatpush1.bf16.msra.mxu0 0
  %76 = vmatprep.subr.bf16.mxu0 0
  %77 = vmatpush1.bf16.msra.mxu0 0
  %78 = vmatprep.subr.bf16.mxu0 0
  %79 = vmatpush1.bf16.msra.mxu0 %v61
  %80 = vmatprep.subr.bf16.mxu0 0
  %81 = vmatpush1.bf16.msra.mxu0 %v60
  %82 = vmatprep.subr.bf16.mxu0 0
  %83 = vmatpush1.bf16.msra.mxu0 %v59
  %84 = vmatprep.subr.bf16.mxu0 0
  %85 = vmatpush1.bf16.msra.mxu0 %v58
  %86 = vmatprep.subr.bf16.mxu0 0
  %87 = vmatpush2.bf16.msra.mxu0 0
  %88 = vmatprep.subr.bf16.mxu0 0
  %89 = vmatpush2.bf16.msra.mxu0 0
  %90 = vmatprep.subr.bf16.mxu0 0
  %91 = vmatpush2.bf16.msra.mxu0 0
  %92 = vmatprep.subr.bf16.mxu0 0
  %93 = vmatpush2.bf16.msra.mxu0 0
  %94 = vmatprep.subr.bf16.mxu0 0
  %95 = vmatpush2.bf16.msra.mxu0 0
  %96 = vmatprep.subr.bf16.mxu0 0
  %97 = vmatpush2.bf16.msra.mxu0 0
  %98 = vmatprep.subr.bf16.mxu0 0
  %99 = vmatpush2.bf16.msra.mxu0 0
  %100 = vmatprep.subr.bf16.mxu0 0
  %101 = vmatpush2.bf16.msra.mxu0 0
  %102 = vmatprep.mubr.bf16.mxu0 0
  %103 = vmatmul.mubr.bf16.gmra.mxu0 %v68
  %v104 = vpop.f32.mrf.mxu0
  %v105 = vadd.f32 %v30, %v104
  %v106 = vpop.f32.mrf.mxu0
  %v107 = vpop.f32.mrf.mxu0
  %v108 = vadd.f32 %v35, %v107
  %v109 = vpop.f32.mrf.mxu0
  %110 = vdwg.mxu0
  %v111 = vsub.f32 0.0, %v105
  %v112 = vsub.f32 0.0, %v108
  %v113 = vmul.f32 %v111, 1.442695
  %v114 = vpow.pop %v113
  %v115 = vmul.f32 %v112, 1.442695
  %v116 = vpow.pop %v115
  %v117 = vadd.f32 %v114, 1.0
  %v118 = vadd.f32 %v116, 1.0
  %v119 = vrcp.pop %v117
  %v120 = vrcp.pop %v118
  %v121 = vmax.f32 %v119, 0.0
  %v122 = vmax.f32 %v120, 0.0
  %v123 = vmin.f32 %v121, 1.0
  %v124 = vmin.f32 %v122, 1.0
  %125 = vst [vmem:[%s3] sm:$0xff] %v123
  %126 = vst [vmem:[%s3 + $0x8] sm:$0xf] %v124
  // Predicated region
  $region14: #{autoencoder_forward.11} parent=0 // pred_check
    _
  $region15: #{autoencoder_forward.11} parent=0 // pred_check_branch
    %128 = sbr.rel (0) target = $region17
  $region16: #{autoencoder_forward.11} parent=0 // pred_region
    _
  $region17: #{autoencoder_forward.11} parent=0 // pred_fallthru
    _
  // Predicated region
  $region18: #{autoencoder_forward.11} parent=0 // pred_check
    _
  $region19: #{autoencoder_forward.11} parent=0 // pred_check_branch
    %130 = sbr.rel (0) target = $region21
  $region20: #{autoencoder_forward.11} parent=0 // pred_region
    _
  $region21: #{autoencoder_forward.11} parent=0 // pred_fallthru
    _

</llo_original>
